<compile_context>
chip_gen: v5e
topology: v5e:2x2
jax: 0.10.0
libtpu: 0.0.40
codegen_flags: <defaults>
</compile_context>

<pallas_src>
import functools

import jax
import jax.numpy as jnp
from jax.experimental import pallas as pl
from jax.experimental.pallas import tpu as pltpu


def _round_up(x, m):
    return ((x + m - 1) // m) * m


# ---------------------------------------------------------------------------
# Pallas kernels (the GEMM hot paths).
# ---------------------------------------------------------------------------
def _gemm_rows_kernel(x_ref, w_ref, bpre_ref, bpost_ref, o_ref, *,
                      pre_relu, post_bias, post_act):
    x = x_ref[...]                                    # (tm, K) f32
    if pre_relu:                                      # fused prev-layer bias+ReLU
        x = jnp.maximum(x + bpre_ref[...], 0.0)
    acc = jnp.dot(x.astype(jnp.bfloat16), w_ref[...],
                  preferred_element_type=jnp.float32)
    if post_bias:
        acc = acc + bpost_ref[...]
    if post_act == "relu":
        acc = jnp.maximum(acc, 0.0)
    elif post_act == "tanh":
        acc = jnp.tanh(acc)
    o_ref[...] = acc.astype(o_ref.dtype)


def gemm_rows(x, w_bf16, bpre=None, bpost=None, post_act="none", tm=512):
    """(M,K) f32 @ (K,N) bf16 -> (M,N) f32.  Rows tiled; N kept whole (lane-dense)."""
    M, K = x.shape
    K2, N = w_bf16.shape
    assert K == K2
    pre_relu = bpre is not None
    post_bias = bpost is not None
    bpre = jnp.zeros((K,), jnp.float32) if bpre is None else bpre.astype(jnp.float32)
    bpost = jnp.zeros((N,), jnp.float32) if bpost is None else bpost.astype(jnp.float32)

    tm_eff = min(tm, _round_up(M, 8))     # no padding of tiny batches to 128
    Mp = _round_up(M, tm_eff)
    xp = jnp.pad(x, ((0, Mp - M), (0, 0))) if Mp != M else x

    out = pl.pallas_call(
        functools.partial(_gemm_rows_kernel, pre_relu=pre_relu,
                          post_bias=post_bias, post_act=post_act),
        out_shape=jax.ShapeDtypeStruct((Mp, N), jnp.float32),
        grid=(Mp // tm_eff,),
        in_specs=[
            pl.BlockSpec((tm_eff, K), lambda i: (i, 0)),
            pl.BlockSpec((K, N), lambda i: (0, 0)),
            pl.BlockSpec((1, K), lambda i: (0, 0)),
            pl.BlockSpec((1, N), lambda i: (0, 0)),
        ],
        out_specs=pl.BlockSpec((tm_eff, N), lambda i: (i, 0)),
        compiler_params=pltpu.CompilerParams(dimension_semantics=("parallel",)),
    )(xp, w_bf16, bpre.reshape(1, K), bpost.reshape(1, N))
    return out[:M] if Mp != M else out


def _gemm_cols_kernel(w_ref, p_ref, b_ref, o_ref):
    acc = jnp.dot(w_ref[...], p_ref[...].astype(jnp.bfloat16),
                  preferred_element_type=jnp.float32)
    o_ref[...] = jnp.tanh(acc + b_ref[...]).astype(o_ref.dtype)


def gemm_cols_bias_tanh(w_bf16, p, b_col, tn=512):
    """(R,K) bf16 @ (K,Mtot) f32 + bias -> tanh; columns tiled (lane-dense output)."""
    R, K = w_bf16.shape
    K2, Mtot = p.shape
    assert K == K2
    tn_eff = min(tn, _round_up(Mtot, 128))
    Mp = _round_up(Mtot, tn_eff)
    pp = jnp.pad(p, ((0, 0), (0, Mp - Mtot))) if Mp != Mtot else p

    out = pl.pallas_call(
        _gemm_cols_kernel,
        out_shape=jax.ShapeDtypeStruct((R, Mp), jnp.float32),
        grid=(Mp // tn_eff,),
        in_specs=[
            pl.BlockSpec((R, K), lambda i: (0, 0)),
            pl.BlockSpec((K, tn_eff), lambda i: (0, i)),
            pl.BlockSpec((R, 1), lambda i: (0, 0)),
        ],
        out_specs=pl.BlockSpec((R, tn_eff), lambda i: (0, i)),
        compiler_params=pltpu.CompilerParams(dimension_semantics=("parallel",)),
    )(w_bf16, pp, b_col)
    return out[:, :Mtot] if Mp != Mtot else out


# ---------------------------------------------------------------------------
# JAX glue: overlap-add scatter for the 4x4/stride-2/pad-1 transposed conv.
# ---------------------------------------------------------------------------
def overlap_add_k4s2p1(y, B, H, W, Cout):
    """y: (B*H*W, 16*Cout) tap-major -> (B, 2H, 2W, Cout), bias/ReLU NOT applied."""
    k, s, p = 4, 2, 1
    y = y.reshape(B, H, W, k, k, Cout)
    canvas = jnp.zeros((B, (H - 1) * s + k, (W - 1) * s + k, Cout), y.dtype)
    for i in range(k):
        for j in range(k):
            canvas = canvas.at[:, i:i + (H - 1) * s + 1:s,
                                  j:j + (W - 1) * s + 1:s, :].add(y[:, :, :, i, j, :])
    Ho, Wo = (H - 1) * s - 2 * p + k, (W - 1) * s - 2 * p + k
    return canvas[:, p:p + Ho, p:p + Wo, :]


# ---------------------------------------------------------------------------
# Parameter preparation (hoisted out of the jitted forward).
# ---------------------------------------------------------------------------
def weight_norm(v, g):
    """PyTorch nn.utils.weight_norm, dim=0: w = g * v / ||v||_{1,2,3}."""
    norm = jnp.sqrt(jnp.sum(v * v, axis=(1, 2, 3), keepdims=True))
    return g * v / norm


def prepare_params(p, num_features, first_kernel, channel):
    nf, fk = num_features, first_kernel
    C1 = nf * 8
    dim_z = p["l1_w"].shape[1]

    # l1: permute output columns so the GEMM result reshapes straight to NHWC.
    wl1 = (p["l1_w"].T.reshape(dim_z, C1, fk, fk)
           .transpose(0, 2, 3, 1).reshape(dim_z, fk * fk * C1))
    bl1 = p["l1_b"].reshape(C1, fk, fk).transpose(1, 2, 0).reshape(-1)

    def deconv_gemm_weight(v, g):
        w = weight_norm(v, g)                         # (Cin, Cout, 4, 4)
        Cin, Cout, kh, kw = w.shape
        # columns ordered (tap_i, tap_j, Cout) -> GEMM output N = 16*Cout (lane-dense)
        return w.transpose(0, 2, 3, 1).reshape(Cin, kh * kw * Cout)

    # conv4: rows=Cout(channel), columns ordered (tap, Cin) to match patches_t.
    wc4 = p["c4_w"].transpose(0, 2, 3, 1).reshape(channel, 9 * nf)

    return {
        "l1_w": wl1.astype(jnp.bfloat16), "l1_b": bl1.astype(jnp.float32),
        "d1_w": deconv_gemm_weight(p["d1_v"], p["d1_g"]).astype(jnp.bfloat16),
        "d1_b": p["d1_b"].astype(jnp.float32),
        "d2_w": deconv_gemm_weight(p["d2_v"], p["d2_g"]).astype(jnp.bfloat16),
        "d2_b": p["d2_b"].astype(jnp.float32),
        "d3_w": deconv_gemm_weight(p["d3_v"], p["d3_g"]).astype(jnp.bfloat16),
        "d3_b": p["d3_b"].astype(jnp.float32),
        "c4_w": wc4.astype(jnp.bfloat16),
        "c4_b": p["c4_b"].reshape(channel, 1).astype(jnp.float32),
    }


# ---------------------------------------------------------------------------
# Forward pass (matches DCGenerator32WN.forward).
# ---------------------------------------------------------------------------
def dc_generator32_wn_forward(z, pp, num_features, first_kernel, channel):
    nf, fk = num_features, first_kernel
    B = z.shape[0]
    C1, C2, C3 = nf * 8, nf * 4, nf * 2

    # l1 (+ fused bias). Columns pre-permuted -> directly NHWC (B, fk, fk, C1).
    h0 = gemm_rows(z, pp["l1_w"], bpost=pp["l1_b"])               # (B, fk*fk*C1)
    x0 = h0.reshape(B * fk * fk, C1)

    # deconv1: lane-dense GEMM, then overlap-add; bias+ReLU deferred.
    y1 = gemm_rows(x0, pp["d1_w"])                                # (B*fk*fk, 16*C2)
    a1 = overlap_add_k4s2p1(y1, B, fk, fk, C2)                    # (B, 2fk, 2fk, C2)

    # deconv2: prologue fuses relu(a1 + b1) inside the Pallas GEMM.
    H1 = 2 * fk
    y2 = gemm_rows(a1.reshape(B * H1 * H1, C2), pp["d2_w"], bpre=pp["d1_b"])
    a2 = overlap_add_k4s2p1(y2, B, H1, H1, C3)                    # (B, 4fk, 4fk, C3)

    # deconv3: prologue fuses relu(a2 + b2).
    H2 = 4 * fk
    y3 = gemm_rows(a2.reshape(B * H2 * H2, C3), pp["d3_w"], bpre=pp["d2_b"])
    a3 = overlap_add_k4s2p1(y3, B, H2, H2, nf)                    # (B, 8fk, 8fk, nf)

    # conv4: bias+ReLU of deconv3 applied before zero-padding (pads must stay 0),
    # 3x3 im2col built in transposed layout, then a lane-dense GEMM with fused
    # bias + tanh (output lanes = spatial axis, a multiple of 128).
    H3 = 8 * fk
    act3 = jnp.maximum(a3 + pp["d3_b"], 0.0)                      # (B, H3, H3, nf)
    xp = jnp.pad(act3, ((0, 0), (1, 1), (1, 1), (0, 0)))
    rows = []
    for di in range(3):
        for dj in range(3):
            sl = xp[:, di:di + H3, dj:dj + H3, :]                 # (B, H3, H3, nf)
            rows.append(sl.transpose(3, 0, 1, 2).reshape(nf, B * H3 * H3))
    patches_t = jnp.concatenate(rows, axis=0)                     # (9*nf, B*H3*H3)

    o = gemm_cols_bias_tanh(pp["c4_w"], patches_t, pp["c4_b"])    # (channel, B*H3*H3)
    return o.reshape(channel, B, H3, H3).transpose(1, 0, 2, 3)    # NCHW


# ---------------------------------------------------------------------------
# Pure-JAX f32 reference (previous validated formulation) for cross-checking.
# ---------------------------------------------------------------------------
def _ref_im2col(x, kh, kw):
    _, Hp, Wp, _ = x.shape
    Ho, Wo = Hp - kh + 1, Wp - kw + 1
    cols = [x[:, i:i + Ho, j:j + Wo, :] for i in range(kh) for j in range(kw)]
    return jnp.concatenate(cols, axis=-1)


def _ref_conv2d(x, w, b, pad):
    kh, kw, Cin, Cout = w.shape
    xp = jnp.pad(x, ((0, 0), (pad, pad), (pad, pad), (0, 0)))
    patches = _ref_im2col(xp, kh, kw)
    N, Ho, Wo, K = patches.shape
    y = patches.reshape(-1, K) @ w.reshape(K, Cout) + b
    return y.reshape(N, Ho, Wo, Cout)


def _ref_deconv(x, w_deconv, b, stride, pad):
    Cin, Cout, kh, kw = w_deconv.shape
    N, H, W, _ = x.shape
    xd = jnp.zeros((N, (H - 1) * stride + 1, (W - 1) * stride + 1, Cin), x.dtype)
    xd = xd.at[:, ::stride, ::stride, :].set(x)
    w_conv = jnp.flip(w_deconv, axis=(2, 3)).transpose(2, 3, 0, 1)
    return _ref_conv2d(xd, w_conv, b, kh - 1 - pad)


def reference_forward(z, params, num_features, first_kernel):
    nf, fk = num_features, first_kernel
    N = z.shape[0]
    x = z @ params["l1_w"].T + params["l1_b"]
    x = x.reshape(N, nf * 8, fk, fk).transpose(0, 2, 3, 1)
    for name in ("d1", "d2", "d3"):
        w = weight_norm(params[name + "_v"], params[name + "_g"])
        x = jax.nn.relu(_ref_deconv(x, w, params[name + "_b"], 2, 1))
    w4 = params["c4_w"].transpose(2, 3, 1, 0)
    x = jnp.tanh(_ref_conv2d(x, w4, params["c4_b"], 1))
    return x.transpose(0, 3, 1, 2)


# ---------------------------------------------------------------------------
# Deterministic parameter init (shapes from DCGenerator32WN.__init__).
# ---------------------------------------------------------------------------
def init_params(key, dim_z, num_features, channel, first_kernel):
    nf, fk = num_features, first_kernel
    ks = jax.random.split(key, 14)

    def nrm(k, shape, scale=0.05):
        return scale * jax.random.normal(k, shape, dtype=jnp.float32)

    p = {}
    p["l1_w"] = nrm(ks[0], (nf * 8 * fk * fk, dim_z))
    p["l1_b"] = nrm(ks[1], (nf * 8 * fk * fk,))
    p["d1_v"] = nrm(ks[2], (nf * 8, nf * 4, 4, 4))
    p["d1_g"] = 1.0 + 0.1 * jax.random.normal(ks[3], (nf * 8, 1, 1, 1), jnp.float32)
    p["d1_b"] = nrm(ks[4], (nf * 4,))
    p["d2_v"] = nrm(ks[5], (nf * 4, nf * 2, 4, 4))
    p["d2_g"] = 1.0 + 0.1 * jax.random.normal(ks[6], (nf * 4, 1, 1, 1), jnp.float32)
    p["d2_b"] = nrm(ks[7], (nf * 2,))
    p["d3_v"] = nrm(ks[8], (nf * 2, nf, 4, 4))
    p["d3_g"] = 1.0 + 0.1 * jax.random.normal(ks[9], (nf * 2, 1, 1, 1), jnp.float32)
    p["d3_b"] = nrm(ks[10], (nf,))
    p["c4_w"] = nrm(ks[11], (channel, nf, 3, 3))
    p["c4_b"] = nrm(ks[12], (channel,))
    return p


if __name__ == "__main__":
    # Small deterministic config: dim_z=32, num_features=8, channel=3, fk=4.
    dim_z, nf, channel, fk, batch = 32, 8, 3, 4, 2

    key = jax.random.PRNGKey(0)
    pkey, zkey = jax.random.split(key)
    params = init_params(pkey, dim_z, nf, channel, fk)
    z = jax.random.normal(zkey, (batch, dim_z), dtype=jnp.float32)

    # Weight-norm + GEMM-layout repack + bf16 casts hoisted out of the jit.
    prepped = prepare_params(params, nf, fk, channel)

    fwd = jax.jit(functools.partial(dc_generator32_wn_forward,
                                    num_features=nf, first_kernel=fk,
                                    channel=channel))
    out = fwd(z, prepped)
    jax.block_until_ready(out)

    assert out.shape == (batch, channel, 8 * fk, 8 * fk), out.shape
    assert bool(jnp.all(jnp.isfinite(out)))
    assert bool(jnp.all(jnp.abs(out) <= 1.0 + 1e-6))  # tanh range

    # Cross-check vs. pure-JAX f32 reference (loose tol: bf16 MXU inputs).
    ref = jax.jit(functools.partial(reference_forward,
                                    num_features=nf, first_kernel=fk))(z, params)
    jax.block_until_ready(ref)
    err = float(jnp.max(jnp.abs(out - ref)))
    assert err < 5e-2, f"max abs err vs reference: {err}"

    print("KERNEL_OK")
</pallas_src>

<mosaic_0001>
module attributes {stable_mosaic.version = 11 : i64} {
  func.func @_gemm_rows_kernel(%arg0: i32, %arg1: memref<8x32xf32, #tpu.memory_space<vmem>>, %arg2: memref<32x1024xbf16, #tpu.memory_space<vmem>>, %arg3: memref<1x32xf32, #tpu.memory_space<vmem>>, %arg4: memref<1x1024xf32, #tpu.memory_space<vmem>>, %arg5: memref<8x1024xf32, #tpu.memory_space<vmem>>) attributes {dimension_semantics = [#tpu.dimension_semantics<parallel>], iteration_bounds = array<i64: 1>, scalar_prefetch = 0 : i64, scratch_operands = 0 : i64, tpu.core_type = #tpu.core_type<tc>, window_params = [{transform_indices = @transform_0, window_bounds = array<i64: 8, 32>}, {pipeline_mode = #tpu.pipeline_mode<synchronous>, transform_indices = @transform_1, window_bounds = array<i64: 32, 1024>}, {pipeline_mode = #tpu.pipeline_mode<synchronous>, transform_indices = @transform_2, window_bounds = array<i64: 1, 32>}, {pipeline_mode = #tpu.pipeline_mode<synchronous>, transform_indices = @transform_3, window_bounds = array<i64: 1, 1024>}, {transform_indices = @transform_4, window_bounds = array<i64: 8, 1024>}]} {
    %c0 = arith.constant 0 : index
    %c0_0 = arith.constant 0 : index
    %0 = vector.load %arg1[%c0, %c0_0] : memref<8x32xf32, #tpu.memory_space<vmem>>, vector<8x32xf32>
    %1 = arith.truncf %0 : vector<8x32xf32> to vector<8x32xbf16>
    %c0_1 = arith.constant 0 : index
    %c0_2 = arith.constant 0 : index
    %2 = vector.load %arg2[%c0_1, %c0_2] : memref<32x1024xbf16, #tpu.memory_space<vmem>>, vector<32x1024xbf16>
    %cst = arith.constant dense<0.000000e+00> : vector<8x1024xf32>
    %3 = tpu.matmul %1, %2, %cst {dimension_numbers = #tpu.dot_dimension_numbers<[1], [0], [0], [1], [0, 0, 1, 1], [], []>} : vector<8x32xbf16>, vector<32x1024xbf16>, vector<8x1024xf32> -> vector<8x1024xf32>
    %c0_3 = arith.constant 0 : index
    %c0_4 = arith.constant 0 : index
    %4 = vector.load %arg4[%c0_3, %c0_4] : memref<1x1024xf32, #tpu.memory_space<vmem>>, vector<1x1024xf32>
    %5 = vector.broadcast %4 : vector<1x1024xf32> to vector<8x1024xf32>
    %6 = arith.addf %3, %5 : vector<8x1024xf32>
    %c0_5 = arith.constant 0 : index
    %c0_6 = arith.constant 0 : index
    %7 = vector.load %arg5[%c0_5, %c0_6] : memref<8x1024xf32, #tpu.memory_space<vmem>>, vector<8x1024xf32>
    tpu.vector_store %arg5[%c0_5, %c0_6], %6 {strides = array<i32>} : memref<8x1024xf32, #tpu.memory_space<vmem>>, vector<8x1024xf32>,
    return
  }
  func.func @transform_0(%arg0: i32) -> (i32, i32) {
    %c0_i32 = arith.constant 0 : i32
    %c0_i32_0 = arith.constant 0 : i32
    return %arg0, %c0_i32 : i32, i32
  }
  func.func @transform_1(%arg0: i32) -> (i32, i32) {
    %c0_i32 = arith.constant 0 : i32
    %c0_i32_0 = arith.constant 0 : i32
    %c0_i32_1 = arith.constant 0 : i32
    return %c0_i32, %c0_i32_0 : i32, i32
  }
  func.func @transform_2(%arg0: i32) -> (i32, i32) {
    %c0_i32 = arith.constant 0 : i32
    %c0_i32_0 = arith.constant 0 : i32
    %c0_i32_1 = arith.constant 0 : i32
    return %c0_i32, %c0_i32_0 : i32, i32
  }
  func.func @transform_3(%arg0: i32) -> (i32, i32) {
    %c0_i32 = arith.constant 0 : i32
    %c0_i32_0 = arith.constant 0 : i32
    %c0_i32_1 = arith.constant 0 : i32
    return %c0_i32, %c0_i32_0 : i32, i32
  }
  func.func @transform_4(%arg0: i32) -> (i32, i32) {
    %c0_i32 = arith.constant 0 : i32
    %c0_i32_0 = arith.constant 0 : i32
    return %arg0, %c0_i32 : i32, i32
  }
}

module attributes {stable_mosaic.version = 11 : i64} {
  func.func @_gemm_rows_kernel(%arg0: i32, %arg1: memref<32x64xf32, #tpu.memory_space<vmem>>, %arg2: memref<64x512xbf16, #tpu.memory_space<vmem>>, %arg3: memref<1x64xf32, #tpu.memory_space<vmem>>, %arg4: memref<1x512xf32, #tpu.memory_space<vmem>>, %arg5: memref<32x512xf32, #tpu.memory_space<vmem>>) attributes {dimension_semantics = [#tpu.dimension_semantics<parallel>], iteration_bounds = array<i64: 1>, scalar_prefetch = 0 : i64, scratch_operands = 0 : i64, tpu.core_type = #tpu.core_type<tc>, window_params = [{transform_indices = @transform_0, window_bounds = array<i64: 32, 64>}, {pipeline_mode = #tpu.pipeline_mode<synchronous>, transform_indices = @transform_1, window_bounds = array<i64: 64, 512>}, {pipeline_mode = #tpu.pipeline_mode<synchronous>, transform_indices = @transform_2, window_bounds = array<i64: 1, 64>}, {pipeline_mode = #tpu.pipeline_mode<synchronous>, transform_indices = @transform_3, window_bounds = array<i64: 1, 512>}, {transform_indices = @transform_4, window_bounds = array<i64: 32, 512>}]} {
    %c0 = arith.constant 0 : index
    %c0_0 = arith.constant 0 : index
    %0 = vector.load %arg1[%c0, %c0_0] : memref<32x64xf32, #tpu.memory_space<vmem>>, vector<32x64xf32>
    %1 = arith.truncf %0 : vector<32x64xf32> to vector<32x64xbf16>
    %c0_1 = arith.constant 0 : index
    %c0_2 = arith.constant 0 : index
    %2 = vector.load %arg2[%c0_1, %c0_2] : memref<64x512xbf16, #tpu.memory_space<vmem>>, vector<64x512xbf16>
    %cst = arith.constant dense<0.000000e+00> : vector<32x512xf32>
    %3 = tpu.matmul %1, %2, %cst {dimension_numbers = #tpu.dot_dimension_numbers<[1], [0], [0], [1], [0, 0, 1, 1], [], []>} : vector<32x64xbf16>, vector<64x512xbf16>, vector<32x512xf32> -> vector<32x512xf32>
    %c0_3 = arith.constant 0 : index
    %c0_4 = arith.constant 0 : index
    %4 = vector.load %arg5[%c0_3, %c0_4] : memref<32x512xf32, #tpu.memory_space<vmem>>, vector<32x512xf32>
    tpu.vector_store %arg5[%c0_3, %c0_4], %3 {strides = array<i32>} : memref<32x512xf32, #tpu.memory_space<vmem>>, vector<32x512xf32>,
    return
  }
  func.func @transform_0(%arg0: i32) -> (i32, i32) {
    %c0_i32 = arith.constant 0 : i32
    %c0_i32_0 = arith.constant 0 : i32
    return %arg0, %c0_i32 : i32, i32
  }
  func.func @transform_1(%arg0: i32) -> (i32, i32) {
    %c0_i32 = arith.constant 0 : i32
    %c0_i32_0 = arith.constant 0 : i32
    %c0_i32_1 = arith.constant 0 : i32
    return %c0_i32, %c0_i32_0 : i32, i32
  }
  func.func @transform_2(%arg0: i32) -> (i32, i32) {
    %c0_i32 = arith.constant 0 : i32
    %c0_i32_0 = arith.constant 0 : i32
    %c0_i32_1 = arith.constant 0 : i32
    return %c0_i32, %c0_i32_0 : i32, i32
  }
  func.func @transform_3(%arg0: i32) -> (i32, i32) {
    %c0_i32 = arith.constant 0 : i32
    %c0_i32_0 = arith.constant 0 : i32
    %c0_i32_1 = arith.constant 0 : i32
    return %c0_i32, %c0_i32_0 : i32, i32
  }
  func.func @transform_4(%arg0: i32) -> (i32, i32) {
    %c0_i32 = arith.constant 0 : i32
    %c0_i32_0 = arith.constant 0 : i32
    return %arg0, %c0_i32 : i32, i32
  }
}

module attributes {stable_mosaic.version = 11 : i64} {
  func.func @_gemm_rows_kernel(%arg0: i32, %arg1: memref<128x32xf32, #tpu.memory_space<vmem>>, %arg2: memref<32x256xbf16, #tpu.memory_space<vmem>>, %arg3: memref<1x32xf32, #tpu.memory_space<vmem>>, %arg4: memref<1x256xf32, #tpu.memory_space<vmem>>, %arg5: memref<128x256xf32, #tpu.memory_space<vmem>>) attributes {dimension_semantics = [#tpu.dimension_semantics<parallel>], iteration_bounds = array<i64: 1>, scalar_prefetch = 0 : i64, scratch_operands = 0 : i64, tpu.core_type = #tpu.core_type<tc>, window_params = [{transform_indices = @transform_0, window_bounds = array<i64: 128, 32>}, {pipeline_mode = #tpu.pipeline_mode<synchronous>, transform_indices = @transform_1, window_bounds = array<i64: 32, 256>}, {pipeline_mode = #tpu.pipeline_mode<synchronous>, transform_indices = @transform_2, window_bounds = array<i64: 1, 32>}, {pipeline_mode = #tpu.pipeline_mode<synchronous>, transform_indices = @transform_3, window_bounds = array<i64: 1, 256>}, {transform_indices = @transform_4, window_bounds = array<i64: 128, 256>}]} {
    %c0 = arith.constant 0 : index
    %c0_0 = arith.constant 0 : index
    %0 = vector.load %arg1[%c0, %c0_0] : memref<128x32xf32, #tpu.memory_space<vmem>>, vector<128x32xf32>
    %c0_1 = arith.constant 0 : index
    %c0_2 = arith.constant 0 : index
    %1 = vector.load %arg3[%c0_1, %c0_2] : memref<1x32xf32, #tpu.memory_space<vmem>>, vector<1x32xf32>
    %2 = vector.broadcast %1 : vector<1x32xf32> to vector<128x32xf32>
    %3 = arith.addf %0, %2 : vector<128x32xf32>
    %cst = arith.constant 0.000000e+00 : f32
    %4 = vector.broadcast %cst : f32 to vector<128x32xf32>
    %5 = arith.maximumf %3, %4 : vector<128x32xf32>
    %6 = arith.truncf %5 : vector<128x32xf32> to vector<128x32xbf16>
    %c0_3 = arith.constant 0 : index
    %c0_4 = arith.constant 0 : index
    %7 = vector.load %arg2[%c0_3, %c0_4] : memref<32x256xbf16, #tpu.memory_space<vmem>>, vector<32x256xbf16>
    %cst_5 = arith.constant dense<0.000000e+00> : vector<128x256xf32>
    %8 = tpu.matmul %6, %7, %cst_5 {dimension_numbers = #tpu.dot_dimension_numbers<[1], [0], [0], [1], [0, 0, 1, 1], [], []>} : vector<128x32xbf16>, vector<32x256xbf16>, vector<128x256xf32> -> vector<128x256xf32>
    %c0_6 = arith.constant 0 : index
    %c0_7 = arith.constant 0 : index
    %9 = vector.load %arg5[%c0_6, %c0_7] : memref<128x256xf32, #tpu.memory_space<vmem>>, vector<128x256xf32>
    tpu.vector_store %arg5[%c0_6, %c0_7], %8 {strides = array<i32>} : memref<128x256xf32, #tpu.memory_space<vmem>>, vector<128x256xf32>,
    return
  }
  func.func @transform_0(%arg0: i32) -> (i32, i32) {
    %c0_i32 = arith.constant 0 : i32
    %c0_i32_0 = arith.constant 0 : i32
    return %arg0, %c0_i32 : i32, i32
  }
  func.func @transform_1(%arg0: i32) -> (i32, i32) {
    %c0_i32 = arith.constant 0 : i32
    %c0_i32_0 = arith.constant 0 : i32
    %c0_i32_1 = arith.constant 0 : i32
    return %c0_i32, %c0_i32_0 : i32, i32
  }
  func.func @transform_2(%arg0: i32) -> (i32, i32) {
    %c0_i32 = arith.constant 0 : i32
    %c0_i32_0 = arith.constant 0 : i32
    %c0_i32_1 = arith.constant 0 : i32
    return %c0_i32, %c0_i32_0 : i32, i32
  }
  func.func @transform_3(%arg0: i32) -> (i32, i32) {
    %c0_i32 = arith.constant 0 : i32
    %c0_i32_0 = arith.constant 0 : i32
    %c0_i32_1 = arith.constant 0 : i32
    return %c0_i32, %c0_i32_0 : i32, i32
  }
  func.func @transform_4(%arg0: i32) -> (i32, i32) {
    %c0_i32 = arith.constant 0 : i32
    %c0_i32_0 = arith.constant 0 : i32
    return %arg0, %c0_i32 : i32, i32
  }
}

module attributes {stable_mosaic.version = 11 : i64} {
  func.func @_gemm_rows_kernel(%arg0: i32, %arg1: memref<512x16xf32, #tpu.memory_space<vmem>>, %arg2: memref<16x128xbf16, #tpu.memory_space<vmem>>, %arg3: memref<1x16xf32, #tpu.memory_space<vmem>>, %arg4: memref<1x128xf32, #tpu.memory_space<vmem>>, %arg5: memref<512x128xf32, #tpu.memory_space<vmem>>) attributes {dimension_semantics = [#tpu.dimension_semantics<parallel>], iteration_bounds = array<i64: 1>, scalar_prefetch = 0 : i64, scratch_operands = 0 : i64, tpu.core_type = #tpu.core_type<tc>, window_params = [{transform_indices = @transform_0, window_bounds = array<i64: 512, 16>}, {pipeline_mode = #tpu.pipeline_mode<synchronous>, transform_indices = @transform_1, window_bounds = array<i64: 16, 128>}, {pipeline_mode = #tpu.pipeline_mode<synchronous>, transform_indices = @transform_2, window_bounds = array<i64: 1, 16>}, {pipeline_mode = #tpu.pipeline_mode<synchronous>, transform_indices = @transform_3, window_bounds = array<i64: 1, 128>}, {transform_indices = @transform_4, window_bounds = array<i64: 512, 128>}]} {
    %c0 = arith.constant 0 : index
    %c0_0 = arith.constant 0 : index
    %0 = vector.load %arg1[%c0, %c0_0] : memref<512x16xf32, #tpu.memory_space<vmem>>, vector<512x16xf32>
    %c0_1 = arith.constant 0 : index
    %c0_2 = arith.constant 0 : index
    %1 = vector.load %arg3[%c0_1, %c0_2] : memref<1x16xf32, #tpu.memory_space<vmem>>, vector<1x16xf32>
    %2 = vector.broadcast %1 : vector<1x16xf32> to vector<512x16xf32>
    %3 = arith.addf %0, %2 : vector<512x16xf32>
    %cst = arith.constant 0.000000e+00 : f32
    %4 = vector.broadcast %cst : f32 to vector<512x16xf32>
    %5 = arith.maximumf %3, %4 : vector<512x16xf32>
    %6 = arith.truncf %5 : vector<512x16xf32> to vector<512x16xbf16>
    %c0_3 = arith.constant 0 : index
    %c0_4 = arith.constant 0 : index
    %7 = vector.load %arg2[%c0_3, %c0_4] : memref<16x128xbf16, #tpu.memory_space<vmem>>, vector<16x128xbf16>
    %cst_5 = arith.constant dense<0.000000e+00> : vector<512x128xf32>
    %8 = tpu.matmul %6, %7, %cst_5 {dimension_numbers = #tpu.dot_dimension_numbers<[1], [0], [0], [1], [0, 0, 1, 1], [], []>} : vector<512x16xbf16>, vector<16x128xbf16>, vector<512x128xf32> -> vector<512x128xf32>
    %c0_6 = arith.constant 0 : index
    %c0_7 = arith.constant 0 : index
    %9 = vector.load %arg5[%c0_6, %c0_7] : memref<512x128xf32, #tpu.memory_space<vmem>>, vector<512x128xf32>
    tpu.vector_store %arg5[%c0_6, %c0_7], %8 {strides = array<i32>} : memref<512x128xf32, #tpu.memory_space<vmem>>, vector<512x128xf32>,
    return
  }
  func.func @transform_0(%arg0: i32) -> (i32, i32) {
    %c0_i32 = arith.constant 0 : i32
    %c0_i32_0 = arith.constant 0 : i32
    return %arg0, %c0_i32 : i32, i32
  }
  func.func @transform_1(%arg0: i32) -> (i32, i32) {
    %c0_i32 = arith.constant 0 : i32
    %c0_i32_0 = arith.constant 0 : i32
    %c0_i32_1 = arith.constant 0 : i32
    return %c0_i32, %c0_i32_0 : i32, i32
  }
  func.func @transform_2(%arg0: i32) -> (i32, i32) {
    %c0_i32 = arith.constant 0 : i32
    %c0_i32_0 = arith.constant 0 : i32
    %c0_i32_1 = arith.constant 0 : i32
    return %c0_i32, %c0_i32_0 : i32, i32
  }
  func.func @transform_3(%arg0: i32) -> (i32, i32) {
    %c0_i32 = arith.constant 0 : i32
    %c0_i32_0 = arith.constant 0 : i32
    %c0_i32_1 = arith.constant 0 : i32
    return %c0_i32, %c0_i32_0 : i32, i32
  }
  func.func @transform_4(%arg0: i32) -> (i32, i32) {
    %c0_i32 = arith.constant 0 : i32
    %c0_i32_0 = arith.constant 0 : i32
    return %arg0, %c0_i32 : i32, i32
  }
}

module attributes {stable_mosaic.version = 11 : i64} {
  func.func @_gemm_cols_kernel(%arg0: i32, %arg1: memref<3x72xbf16, #tpu.memory_space<vmem>>, %arg2: memref<72x512xf32, #tpu.memory_space<vmem>>, %arg3: memref<3x1xf32, #tpu.memory_space<vmem>>, %arg4: memref<3x512xf32, #tpu.memory_space<vmem>>) attributes {dimension_semantics = [#tpu.dimension_semantics<parallel>], iteration_bounds = array<i64: 4>, scalar_prefetch = 0 : i64, scratch_operands = 0 : i64, tpu.core_type = #tpu.core_type<tc>, window_params = [{pipeline_mode = #tpu.pipeline_mode<synchronous>, transform_indices = @transform_0, window_bounds = array<i64: 3, 72>}, {transform_indices = @transform_1, window_bounds = array<i64: 72, 512>}, {pipeline_mode = #tpu.pipeline_mode<synchronous>, transform_indices = @transform_2, window_bounds = array<i64: 3, 1>}, {transform_indices = @transform_3, window_bounds = array<i64: 3, 512>}]} {
    %c0 = arith.constant 0 : index
    %c0_0 = arith.constant 0 : index
    %0 = vector.load %arg1[%c0, %c0_0] : memref<3x72xbf16, #tpu.memory_space<vmem>>, vector<3x72xbf16>
    %c0_1 = arith.constant 0 : index
    %c0_2 = arith.constant 0 : index
    %1 = vector.load %arg2[%c0_1, %c0_2] : memref<72x512xf32, #tpu.memory_space<vmem>>, vector<72x512xf32>
    %2 = arith.truncf %1 : vector<72x512xf32> to vector<72x512xbf16>
    %cst = arith.constant dense<0.000000e+00> : vector<3x512xf32>
    %3 = tpu.matmul %0, %2, %cst {dimension_numbers = #tpu.dot_dimension_numbers<[1], [0], [0], [1], [0, 0, 1, 1], [], []>} : vector<3x72xbf16>, vector<72x512xbf16>, vector<3x512xf32> -> vector<3x512xf32>
    %c0_3 = arith.constant 0 : index
    %c0_4 = arith.constant 0 : index
    %4 = vector.load %arg3[%c0_3, %c0_4] : memref<3x1xf32, #tpu.memory_space<vmem>>, vector<3x1xf32>
    %5 = vector.broadcast %4 : vector<3x1xf32> to vector<3x512xf32>
    %6 = arith.addf %3, %5 : vector<3x512xf32>
    %7 = math.tanh %6 : vector<3x512xf32>
    %c0_5 = arith.constant 0 : index
    %c0_6 = arith.constant 0 : index
    %8 = vector.load %arg4[%c0_5, %c0_6] : memref<3x512xf32, #tpu.memory_space<vmem>>, vector<3x512xf32>
    tpu.vector_store %arg4[%c0_5, %c0_6], %7 {strides = array<i32>} : memref<3x512xf32, #tpu.memory_space<vmem>>, vector<3x512xf32>,
    return
  }
  func.func @transform_0(%arg0: i32) -> (i32, i32) {
    %c0_i32 = arith.constant 0 : i32
    %c0_i32_0 = arith.constant 0 : i32
    %c0_i32_1 = arith.constant 0 : i32
    return %c0_i32, %c0_i32_0 : i32, i32
  }
  func.func @transform_1(%arg0: i32) -> (i32, i32) {
    %c0_i32 = arith.constant 0 : i32
    %c0_i32_0 = arith.constant 0 : i32
    return %c0_i32, %arg0 : i32, i32
  }
  func.func @transform_2(%arg0: i32) -> (i32, i32) {
    %c0_i32 = arith.constant 0 : i32
    %c0_i32_0 = arith.constant 0 : i32
    %c0_i32_1 = arith.constant 0 : i32
    return %c0_i32, %c0_i32_0 : i32, i32
  }
  func.func @transform_3(%arg0: i32) -> (i32, i32) {
    %c0_i32 = arith.constant 0 : i32
    %c0_i32_0 = arith.constant 0 : i32
    return %c0_i32, %arg0 : i32, i32
  }
}

</mosaic_0001>

<llo_original>
// kernel: dc_generator32_wn_forward.5
$region0: #{dc_generator32_wn_forward.5}
  #allocation0 [shape = 'u32[]', space=smem, size = 0x4, offset = 0x4, fixed_abs, tag = 'smem constant byte address 0x4 - core index']
  #allocation1 [shape = 'u32[72,128]{1,0:T(1,128)}', space=vmem, size = 0x9000, scoped, tag = 'internal scratch']
  %s0 = inlined_call_operand.vmem [shape: f32[8,32], index: 0, kind: input, shape index: {}]
  %s1 = inlined_call_operand.hbm [shape: bf16[32,1024], index: 1, kind: input, shape index: {}]
  %s2 = inlined_call_operand.vmem [shape: f32[1,32], index: 2, kind: input, shape index: {}]
  %s3 = inlined_call_operand.hbm [shape: f32[1,1024], index: 3, kind: input, shape index: {}]
  %s4 = inlined_call_operand.vmem [shape: f32[8,1024], index: 4, kind: output, shape index: {}]
  %s5 = sld [smem:[#allocation0]]
  $region34: #{dc_generator32_wn_forward.5} parent=0
    _
  %s7 = ssub.s32 1, %s5
  %s8 = scalar_select 0, %s7, %s5
  $region1: #{dc_generator32_wn_forward.5} parent=0
    #allocation2 [shape = 'u8[65536]{0}', space=vmem, size = 0x10000, scoped, tag = 'input window, operand 1, single buffered']
    #allocation3 [shape = 's32[1]{0}', space=sflag, size = 0x4, scoped, tag = 'scoped memory for dc_generator32_wn_forward.5']
    #allocation4 [shape = 'u8[4096]{0}', space=vmem, size = 0x1000, scoped, tag = 'input window, operand 3, single buffered']
    #allocation5 [shape = 's32[1]{0}', space=sflag, size = 0x4, scoped, tag = 'scoped memory for dc_generator32_wn_forward.5']
    %9 = vsyncpa [#allocation3], 0
    %10 = vsyncpa [#allocation5], 0
    // Predicated region
    $region2: #{dc_generator32_wn_forward.5} parent=1 // pred_check
      _
    $region3: #{dc_generator32_wn_forward.5} parent=1 // pred_check_branch
      %12 = sbr.rel (0) target = $region5
    $region4: #{dc_generator32_wn_forward.5} parent=1 // pred_region
      _
    $region5: #{dc_generator32_wn_forward.5} parent=1 // pred_fallthru
      _
    // Predicated region
    $region6: #{dc_generator32_wn_forward.5} parent=1 // pred_check
      _
    $region7: #{dc_generator32_wn_forward.5} parent=1 // pred_check_branch
      %14 = sbr.rel (0) target = $region9
    $region8: #{dc_generator32_wn_forward.5} parent=1 // pred_region
      %16 = vsyncadd [#allocation3], 0
      %s17 = sshll.u32 %s1, 4
      %s18 = int_to_ptr.hbm [resolvable:$true] %s17
      %s19 = sshll.u32 [#allocation2], 4
      %s20 = int_to_ptr.vmem [resolvable:$true] %s19
      %25 = dma.hbm_to_vmem [thread:$0]  %s18, 2048, %s20, [#allocation3], 512, 512, 32
    $region9: #{dc_generator32_wn_forward.5} parent=1 // pred_fallthru
      _
    // Predicated region
    $region10: #{dc_generator32_wn_forward.5} parent=1 // pred_check
      _
    $region11: #{dc_generator32_wn_forward.5} parent=1 // pred_check_branch
      %27 = sbr.rel (0) target = $region13
    $region12: #{dc_generator32_wn_forward.5} parent=1 // pred_region
      _
    $region13: #{dc_generator32_wn_forward.5} parent=1 // pred_fallthru
      _
    // Predicated region
    $region14: #{dc_generator32_wn_forward.5} parent=1 // pred_check
      _
    $region15: #{dc_generator32_wn_forward.5} parent=1 // pred_check_branch
      %29 = sbr.rel (0) target = $region17
    $region16: #{dc_generator32_wn_forward.5} parent=1 // pred_region
      %31 = vsyncadd [#allocation5], 0
      %s33 = sshll.u32 %s3, 4
      %s34 = int_to_ptr.hbm [resolvable:$true] %s33
      %s35 = sshll.u32 [#allocation4], 4
      %s36 = int_to_ptr.vmem [resolvable:$true] %s35
      %38 = dma.hbm_to_vmem [thread:$0]  %s34, 128, %s36, [#allocation5]
    $region17: #{dc_generator32_wn_forward.5} parent=1 // pred_fallthru
      _
    // Predicated region
    $region18: #{dc_generator32_wn_forward.5} parent=1 // pred_check
      _
    $region19: #{dc_generator32_wn_forward.5} parent=1 // pred_check_branch
      %40 = sbr.rel (0) target = $region21
    $region20: #{dc_generator32_wn_forward.5} parent=1 // pred_region
      %42 = dma.done [#allocation3], 2048
    $region21: #{dc_generator32_wn_forward.5} parent=1 // pred_fallthru
      _
    // Predicated region
    $region22: #{dc_generator32_wn_forward.5} parent=1 // pred_check
      _
    $region23: #{dc_generator32_wn_forward.5} parent=1 // pred_check_branch
      %44 = sbr.rel (0) target = $region25
    $region24: #{dc_generator32_wn_forward.5} parent=1 // pred_region
      %46 = dma.done [#allocation5], 128
    $region25: #{dc_generator32_wn_forward.5} parent=1 // pred_fallthru
      _
    %v48 = vld [vmem:[%s0] sm:$0xff]
    %v49 = vpack.c.bf16 %v48, %v48
    %v50 = vld [vmem:[#allocation2] sm:$0xff]
    %v51 = vld [vmem:[#allocation2 + $0x8] sm:$0xff]
    %v52 = vld [vmem:[#allocation2 + $0x10] sm:$0xff]
    %v53 = vld [vmem:[#allocation2 + $0x18] sm:$0xff]
    %v54 = vld [vmem:[#allocation2 + $0x20] sm:$0xff]
    %v55 = vld [vmem:[#allocation2 + $0x28] sm:$0xff]
    %v56 = vld [vmem:[#allocation2 + $0x30] sm:$0xff]
    %v57 = vld [vmem:[#allocation2 + $0x38] sm:$0xff]
    %v58 = vld [vmem:[#allocation2 + $0x40] sm:$0xff]
    %v59 = vld [vmem:[#allocation2 + $0x48] sm:$0xff]
    %v60 = vld [vmem:[#allocation2 + $0x50] sm:$0xff]
    %v61 = vld [vmem:[#allocation2 + $0x58] sm:$0xff]
    %v62 = vld [vmem:[#allocation2 + $0x60] sm:$0xff]
    %v63 = vld [vmem:[#allocation2 + $0x68] sm:$0xff]
    %v64 = vld [vmem:[#allocation2 + $0x70] sm:$0xff]
    %v65 = vld [vmem:[#allocation2 + $0x78] sm:$0xff]
    %v66 = vld [vmem:[#allocation4] sm:$0xff]
    %v68 = vperm.slane %v66, 0
    %v69 = vperm.slane %v66, 1
    %v70 = vperm.slane %v66, 2
    %v71 = vperm.slane %v66, 3
    %v72 = vperm.slane %v66, 4
    %v73 = vperm.slane %v66, 5
    %v74 = vperm.slane %v66, 6
    %v75 = vperm.slane %v66, 7
    %v100 = vunpack.c.l.b16 %v50
    %v101 = vunpack.c.h.b16 %v50
    %v102 = vunpack.c.l.b16 %v51
    %v103 = vunpack.c.h.b16 %v51
    %v104 = vunpack.c.l.b16 %v52
    %v105 = vunpack.c.h.b16 %v52
    %v106 = vunpack.c.l.b16 %v53
    %v107 = vunpack.c.h.b16 %v53
    %v108 = vunpack.c.l.b16 %v54
    %v109 = vunpack.c.h.b16 %v54
    %v110 = vunpack.c.l.b16 %v55
    %v111 = vunpack.c.h.b16 %v55
    %v112 = vunpack.c.l.b16 %v56
    %v113 = vunpack.c.h.b16 %v56
    %v114 = vunpack.c.l.b16 %v57
    %v115 = vunpack.c.h.b16 %v57
    %v116 = vunpack.c.l.b16 %v58
    %v117 = vunpack.c.h.b16 %v58
    %v118 = vunpack.c.l.b16 %v59
    %v119 = vunpack.c.h.b16 %v59
    %v120 = vunpack.c.l.b16 %v60
    %v121 = vunpack.c.h.b16 %v60
    %v122 = vunpack.c.l.b16 %v61
    %v123 = vunpack.c.h.b16 %v61
    %v124 = vunpack.c.l.b16 %v62
    %v125 = vunpack.c.h.b16 %v62
    %v126 = vunpack.c.l.b16 %v63
    %v127 = vunpack.c.h.b16 %v63
    %v128 = vunpack.c.l.b16 %v64
    %v129 = vunpack.c.h.b16 %v64
    %v130 = vunpack.c.l.b16 %v65
    %v131 = vunpack.c.h.b16 %v65
    %v132 = vpack.c.b16 %v108, %v100
    %v133 = vpack.c.b16 %v109, %v101
    %v134 = vpack.c.b16 %v110, %v102
    %v135 = vpack.c.b16 %v111, %v103
    %v136 = vpack.c.b16 %v112, %v104
    %v137 = vpack.c.b16 %v113, %v105
    %v138 = vpack.c.b16 %v114, %v106
    %v139 = vpack.c.b16 %v115, %v107
    %v140 = vpack.c.b16 %v124, %v116
    %v141 = vpack.c.b16 %v125, %v117
    %v142 = vpack.c.b16 %v126, %v118
    %v143 = vpack.c.b16 %v127, %v119
    %v144 = vpack.c.b16 %v128, %v120
    %v145 = vpack.c.b16 %v129, %v121
    %v146 = vpack.c.b16 %v130, %v122
    %v147 = vpack.c.b16 %v131, %v123
    %vm164 = vcmask 261120
    %v166 = vsel %vm164, %v49, 0
    %168 = vmatpush.bf16.msra.mxu0 0
    %169 = vmatpush.bf16.msra.mxu0 0
    %170 = vmatpush.bf16.msra.mxu0 0
    %171 = vmatpush.bf16.msra.mxu0 0
    %172 = vmatpush.bf16.msra.mxu0 0
    %173 = vmatpush.bf16.msra.mxu0 0
    %174 = vmatpush.bf16.msra.mxu0 %v140
    %175 = vmatpush.bf16.msra.mxu0 %v132
    %176 = vmatmul.bf16.gmra.mxu0 %v166
    %v177 = vpop.f32.mrf.mxu0
    %v178 = vadd.f32 %v68, %v177
    %v179 = vpop.f32.mrf.mxu0
    %180 = vdwg.mxu0
    %181 = vmatpush.bf16.msra.mxu0 0
    %182 = vmatpush.bf16.msra.mxu0 0
    %183 = vmatpush.bf16.msra.mxu0 0
    %184 = vmatpush.bf16.msra.mxu0 0
    %185 = vmatpush.bf16.msra.mxu0 0
    %186 = vmatpush.bf16.msra.mxu0 0
    %187 = vmatpush.bf16.msra.mxu0 %v141
    %188 = vmatpush.bf16.msra.mxu0 %v133
    %189 = vmatmul.bf16.gmra.mxu0 %v166
    %v190 = vpop.f32.mrf.mxu0
    %v191 = vadd.f32 %v69, %v190
    %v192 = vpop.f32.mrf.mxu0
    %193 = vdwg.mxu0
    %194 = vmatpush.bf16.msra.mxu0 0
    %195 = vmatpush.bf16.msra.mxu0 0
    %196 = vmatpush.bf16.msra.mxu0 0
    %197 = vmatpush.bf16.msra.mxu0 0
    %198 = vmatpush.bf16.msra.mxu0 0
    %199 = vmatpush.bf16.msra.mxu0 0
    %200 = vmatpush.bf16.msra.mxu0 %v142
    %201 = vmatpush.bf16.msra.mxu0 %v134
    %202 = vmatmul.bf16.gmra.mxu0 %v166
    %v203 = vpop.f32.mrf.mxu0
    %v204 = vadd.f32 %v70, %v203
    %v205 = vpop.f32.mrf.mxu0
    %206 = vdwg.mxu0
    %207 = vmatpush.bf16.msra.mxu0 0
    %208 = vmatpush.bf16.msra.mxu0 0
    %209 = vmatpush.bf16.msra.mxu0 0
    %210 = vmatpush.bf16.msra.mxu0 0
    %211 = vmatpush.bf16.msra.mxu0 0
    %212 = vmatpush.bf16.msra.mxu0 0
    %213 = vmatpush.bf16.msra.mxu0 %v143
    %214 = vmatpush.bf16.msra.mxu0 %v135
    %215 = vmatmul.bf16.gmra.mxu0 %v166
    %v216 = vpop.f32.mrf.mxu0
    %v217 = vadd.f32 %v71, %v216
    %v218 = vpop.f32.mrf.mxu0
    %219 = vdwg.mxu0
    %220 = vmatpush.bf16.msra.mxu0 0
    %221 = vmatpush.bf16.msra.mxu0 0
    %222 = vmatpush.bf16.msra.mxu0 0
    %223 = vmatpush.bf16.msra.mxu0 0
    %224 = vmatpush.bf16.msra.mxu0 0
    %225 = vmatpush.bf16.msra.mxu0 0
    %226 = vmatpush.bf16.msra.mxu0 %v144
    %227 = vmatpush.bf16.msra.mxu0 %v136
    %228 = vmatmul.bf16.gmra.mxu0 %v166
    %v229 = vpop.f32.mrf.mxu0
    %v230 = vadd.f32 %v72, %v229
    %v231 = vpop.f32.mrf.mxu0
    %232 = vdwg.mxu0
    %233 = vmatpush.bf16.msra.mxu0 0
    %234 = vmatpush.bf16.msra.mxu0 0
    %235 = vmatpush.bf16.msra.mxu0 0
    %236 = vmatpush.bf16.msra.mxu0 0
    %237 = vmatpush.bf16.msra.mxu0 0
    %238 = vmatpush.bf16.msra.mxu0 0
    %239 = vmatpush.bf16.msra.mxu0 %v145
    %240 = vmatpush.bf16.msra.mxu0 %v137
    %241 = vmatmul.bf16.gmra.mxu0 %v166
    %v242 = vpop.f32.mrf.mxu0
    %v243 = vadd.f32 %v73, %v242
    %v244 = vpop.f32.mrf.mxu0
    %245 = vdwg.mxu0
    %246 = vmatpush.bf16.msra.mxu0 0
    %247 = vmatpush.bf16.msra.mxu0 0
    %248 = vmatpush.bf16.msra.mxu0 0
    %249 = vmatpush.bf16.msra.mxu0 0
    %250 = vmatpush.bf16.msra.mxu0 0
    %251 = vmatpush.bf16.msra.mxu0 0
    %252 = vmatpush.bf16.msra.mxu0 %v146
    %253 = vmatpush.bf16.msra.mxu0 %v138
    %254 = vmatmul.bf16.gmra.mxu0 %v166
    %v255 = vpop.f32.mrf.mxu0
    %v256 = vadd.f32 %v74, %v255
    %v257 = vpop.f32.mrf.mxu0
    %258 = vdwg.mxu0
    %259 = vmatpush.bf16.msra.mxu0 0
    %260 = vmatpush.bf16.msra.mxu0 0
    %261 = vmatpush.bf16.msra.mxu0 0
    %262 = vmatpush.bf16.msra.mxu0 0
    %263 = vmatpush.bf16.msra.mxu0 0
    %264 = vmatpush.bf16.msra.mxu0 0
    %265 = vmatpush.bf16.msra.mxu0 %v147
    %266 = vmatpush.bf16.msra.mxu0 %v139
    %267 = vmatmul.bf16.gmra.mxu0 %v166
    %v268 = vpop.f32.mrf.mxu0
    %v269 = vadd.f32 %v75, %v268
    %v270 = vpop.f32.mrf.mxu0
    %271 = vdwg.mxu0
    %272 = vst [vmem:[%s4] sm:$0xff] %v178
    %273 = vst [vmem:[%s4 + $0x8] sm:$0xff] %v191
    %274 = vst [vmem:[%s4 + $0x10] sm:$0xff] %v204
    %275 = vst [vmem:[%s4 + $0x18] sm:$0xff] %v217
    %276 = vst [vmem:[%s4 + $0x20] sm:$0xff] %v230
    %277 = vst [vmem:[%s4 + $0x28] sm:$0xff] %v243
    %278 = vst [vmem:[%s4 + $0x30] sm:$0xff] %v256
    %279 = vst [vmem:[%s4 + $0x38] sm:$0xff] %v269
    // Predicated region
    $region26: #{dc_generator32_wn_forward.5} parent=1 // pred_check
      _
    $region27: #{dc_generator32_wn_forward.5} parent=1 // pred_check_branch
      %281 = sbr.rel (0) target = $region29
    $region28: #{dc_generator32_wn_forward.5} parent=1 // pred_region
      _
    $region29: #{dc_generator32_wn_forward.5} parent=1 // pred_fallthru
      _
    // Predicated region
    $region30: #{dc_generator32_wn_forward.5} parent=1 // pred_check
      _
    $region31: #{dc_generator32_wn_forward.5} parent=1 // pred_check_branch
      %283 = sbr.rel (0) target = $region33
    $region32: #{dc_generator32_wn_forward.5} parent=1 // pred_region
      _
    $region33: #{dc_generator32_wn_forward.5} parent=1 // pred_fallthru
      _
    %284 = vsyncpa [#allocation3], 1
    %285 = vsyncpa [#allocation5], 1

// kernel: dc_generator32_wn_forward.6
$region0: #{dc_generator32_wn_forward.6}
  #allocation0 [shape = 'u32[]', space=smem, size = 0x4, offset = 0x4, fixed_abs, tag = 'smem constant byte address 0x4 - core index']
  #allocation1 [shape = 'u32[72,128]{1,0:T(1,128)}', space=vmem, size = 0x9000, scoped, tag = 'internal scratch']
  %s0 = inlined_call_operand.vmem [shape: f32[32,64], index: 0, kind: input, shape index: {}]
  %s1 = inlined_call_operand.hbm [shape: bf16[64,512], index: 1, kind: input, shape index: {}]
  %s2 = inlined_call_operand.vmem [shape: f32[1,64], index: 2, kind: input, shape index: {}]
  %s3 = inlined_call_operand.vmem [shape: f32[1,512], index: 3, kind: input, shape index: {}]
  %s4 = inlined_call_operand.vmem [shape: f32[32,512], index: 4, kind: output, shape index: {}]
  %s5 = sld [smem:[#allocation0]]
  $region30: #{dc_generator32_wn_forward.6} parent=0
    _
  %s7 = ssub.s32 1, %s5
  %s8 = scalar_select 0, %s7, %s5
  $region1: #{dc_generator32_wn_forward.6} parent=0
    #allocation2 [shape = 'u8[65536]{0}', space=vmem, size = 0x10000, scoped, tag = 'input window, operand 1, single buffered']
    #allocation3 [shape = 's32[1]{0}', space=sflag, size = 0x4, scoped, tag = 'scoped memory for dc_generator32_wn_forward.6']
    %9 = vsyncpa [#allocation3], 0
    // Predicated region
    $region2: #{dc_generator32_wn_forward.6} parent=1 // pred_check
      _
    $region3: #{dc_generator32_wn_forward.6} parent=1 // pred_check_branch
      %11 = sbr.rel (0) target = $region5
    $region4: #{dc_generator32_wn_forward.6} parent=1 // pred_region
      _
    $region5: #{dc_generator32_wn_forward.6} parent=1 // pred_fallthru
      _
    // Predicated region
    $region6: #{dc_generator32_wn_forward.6} parent=1 // pred_check
      _
    $region7: #{dc_generator32_wn_forward.6} parent=1 // pred_check_branch
      %13 = sbr.rel (0) target = $region9
    $region8: #{dc_generator32_wn_forward.6} parent=1 // pred_region
      %15 = vsyncadd [#allocation3], 0
      %s16 = sshll.u32 %s1, 4
      %s17 = int_to_ptr.hbm [resolvable:$true] %s16
      %s18 = sshll.u32 [#allocation2], 4
      %s19 = int_to_ptr.vmem [resolvable:$true] %s18
      %24 = dma.hbm_to_vmem [thread:$0]  %s17, 2048, %s19, [#allocation3], 256, 256, 16
    $region9: #{dc_generator32_wn_forward.6} parent=1 // pred_fallthru
      _
    // Predicated region
    $region10: #{dc_generator32_wn_forward.6} parent=1 // pred_check
      _
    $region11: #{dc_generator32_wn_forward.6} parent=1 // pred_check_branch
      %26 = sbr.rel (0) target = $region13
    $region12: #{dc_generator32_wn_forward.6} parent=1 // pred_region
      _
    $region13: #{dc_generator32_wn_forward.6} parent=1 // pred_fallthru
      _
    // Predicated region
    $region14: #{dc_generator32_wn_forward.6} parent=1 // pred_check
      _
    $region15: #{dc_generator32_wn_forward.6} parent=1 // pred_check_branch
      %28 = sbr.rel (0) target = $region17
    $region16: #{dc_generator32_wn_forward.6} parent=1 // pred_region
      _
    $region17: #{dc_generator32_wn_forward.6} parent=1 // pred_fallthru
      _
    // Predicated region
    $region18: #{dc_generator32_wn_forward.6} parent=1 // pred_check
      _
    $region19: #{dc_generator32_wn_forward.6} parent=1 // pred_check_branch
      %30 = sbr.rel (0) target = $region21
    $region20: #{dc_generator32_wn_forward.6} parent=1 // pred_region
      %32 = dma.done [#allocation3], 2048
    $region21: #{dc_generator32_wn_forward.6} parent=1 // pred_fallthru
      _
    %v34 = vld [vmem:[%s0] sm:$0xff]
    %v35 = vld [vmem:[%s0 + $0x8] sm:$0xff]
    %v36 = vld [vmem:[%s0 + $0x10] sm:$0xff]
    %v37 = vld [vmem:[%s0 + $0x18] sm:$0xff]
    %v38 = vpack.c.bf16 %v35, %v34
    %v39 = vpack.c.bf16 %v37, %v36
    %v40 = vld [vmem:[#allocation2] sm:$0xff]
    %v41 = vld [vmem:[#allocation2 + $0x8] sm:$0xff]
    %v42 = vld [vmem:[#allocation2 + $0x10] sm:$0xff]
    %v43 = vld [vmem:[#allocation2 + $0x18] sm:$0xff]
    %v44 = vld [vmem:[#allocation2 + $0x20] sm:$0xff]
    %v45 = vld [vmem:[#allocation2 + $0x28] sm:$0xff]
    %v46 = vld [vmem:[#allocation2 + $0x30] sm:$0xff]
    %v47 = vld [vmem:[#allocation2 + $0x38] sm:$0xff]
    %v48 = vld [vmem:[#allocation2 + $0x40] sm:$0xff]
    %v49 = vld [vmem:[#allocation2 + $0x48] sm:$0xff]
    %v50 = vld [vmem:[#allocation2 + $0x50] sm:$0xff]
    %v51 = vld [vmem:[#allocation2 + $0x58] sm:$0xff]
    %v52 = vld [vmem:[#allocation2 + $0x60] sm:$0xff]
    %v53 = vld [vmem:[#allocation2 + $0x68] sm:$0xff]
    %v54 = vld [vmem:[#allocation2 + $0x70] sm:$0xff]
    %v55 = vld [vmem:[#allocation2 + $0x78] sm:$0xff]
    %v72 = vunpack.c.l.b16 %v40
    %v73 = vunpack.c.h.b16 %v40
    %v74 = vunpack.c.l.b16 %v41
    %v75 = vunpack.c.h.b16 %v41
    %v76 = vunpack.c.l.b16 %v42
    %v77 = vunpack.c.h.b16 %v42
    %v78 = vunpack.c.l.b16 %v43
    %v79 = vunpack.c.h.b16 %v43
    %v80 = vunpack.c.l.b16 %v44
    %v81 = vunpack.c.h.b16 %v44
    %v82 = vunpack.c.l.b16 %v45
    %v83 = vunpack.c.h.b16 %v45
    %v84 = vunpack.c.l.b16 %v46
    %v85 = vunpack.c.h.b16 %v46
    %v86 = vunpack.c.l.b16 %v47
    %v87 = vunpack.c.h.b16 %v47
    %v88 = vunpack.c.l.b16 %v48
    %v89 = vunpack.c.h.b16 %v48
    %v90 = vunpack.c.l.b16 %v49
    %v91 = vunpack.c.h.b16 %v49
    %v92 = vunpack.c.l.b16 %v50
    %v93 = vunpack.c.h.b16 %v50
    %v94 = vunpack.c.l.b16 %v51
    %v95 = vunpack.c.h.b16 %v51
    %v96 = vunpack.c.l.b16 %v52
    %v97 = vunpack.c.h.b16 %v52
    %v98 = vunpack.c.l.b16 %v53
    %v99 = vunpack.c.h.b16 %v53
    %v100 = vunpack.c.l.b16 %v54
    %v101 = vunpack.c.h.b16 %v54
    %v102 = vunpack.c.l.b16 %v55
    %v103 = vunpack.c.h.b16 %v55
    %v104 = vpack.c.b16 %v76, %v72
    %v105 = vpack.c.b16 %v77, %v73
    %v106 = vpack.c.b16 %v78, %v74
    %v107 = vpack.c.b16 %v79, %v75
    %v108 = vpack.c.b16 %v84, %v80
    %v109 = vpack.c.b16 %v85, %v81
    %v110 = vpack.c.b16 %v86, %v82
    %v111 = vpack.c.b16 %v87, %v83
    %v112 = vpack.c.b16 %v92, %v88
    %v113 = vpack.c.b16 %v93, %v89
    %v114 = vpack.c.b16 %v94, %v90
    %v115 = vpack.c.b16 %v95, %v91
    %v116 = vpack.c.b16 %v100, %v96
    %v117 = vpack.c.b16 %v101, %v97
    %v118 = vpack.c.b16 %v102, %v98
    %v119 = vpack.c.b16 %v103, %v99
    %vm136 = vcmask 523264
    %v138 = vsel %vm136, %v38, 0
    %v141 = vsel %vm136, %v39, 0
    %143 = vmatpush.bf16.msra.mxu0 0
    %144 = vmatpush.bf16.msra.mxu0 0
    %145 = vmatpush.bf16.msra.mxu0 0
    %146 = vmatpush.bf16.msra.mxu0 0
    %147 = vmatpush.bf16.msra.mxu0 %v116
    %148 = vmatpush.bf16.msra.mxu0 %v112
    %149 = vmatpush.bf16.msra.mxu0 %v108
    %150 = vmatpush.bf16.msra.mxu0 %v104
    %151 = vmatmul.bf16.gmra.mxu0 %v138
    %v152 = vpop.f32.mrf.mxu0
    %v153 = vadd.f32 0.0, %v152
    %v154 = vpop.f32.mrf.mxu0
    %v155 = vadd.f32 0.0, %v154
    %156 = vmatmul.bf16.gmra.mxu0 %v141
    %v157 = vpop.f32.mrf.mxu0
    %v158 = vadd.f32 0.0, %v157
    %v159 = vpop.f32.mrf.mxu0
    %v160 = vadd.f32 0.0, %v159
    %161 = vdwg.mxu0
    %162 = vmatpush.bf16.msra.mxu0 0
    %163 = vmatpush.bf16.msra.mxu0 0
    %164 = vmatpush.bf16.msra.mxu0 0
    %165 = vmatpush.bf16.msra.mxu0 0
    %166 = vmatpush.bf16.msra.mxu0 %v117
    %167 = vmatpush.bf16.msra.mxu0 %v113
    %168 = vmatpush.bf16.msra.mxu0 %v109
    %169 = vmatpush.bf16.msra.mxu0 %v105
    %170 = vmatmul.bf16.gmra.mxu0 %v138
    %v171 = vpop.f32.mrf.mxu0
    %v172 = vadd.f32 0.0, %v171
    %v173 = vpop.f32.mrf.mxu0
    %v174 = vadd.f32 0.0, %v173
    %175 = vmatmul.bf16.gmra.mxu0 %v141
    %v176 = vpop.f32.mrf.mxu0
    %v177 = vadd.f32 0.0, %v176
    %v178 = vpop.f32.mrf.mxu0
    %v179 = vadd.f32 0.0, %v178
    %180 = vdwg.mxu0
    %181 = vmatpush.bf16.msra.mxu0 0
    %182 = vmatpush.bf16.msra.mxu0 0
    %183 = vmatpush.bf16.msra.mxu0 0
    %184 = vmatpush.bf16.msra.mxu0 0
    %185 = vmatpush.bf16.msra.mxu0 %v118
    %186 = vmatpush.bf16.msra.mxu0 %v114
    %187 = vmatpush.bf16.msra.mxu0 %v110
    %188 = vmatpush.bf16.msra.mxu0 %v106
    %189 = vmatmul.bf16.gmra.mxu0 %v138
    %v190 = vpop.f32.mrf.mxu0
    %v191 = vadd.f32 0.0, %v190
    %v192 = vpop.f32.mrf.mxu0
    %v193 = vadd.f32 0.0, %v192
    %194 = vmatmul.bf16.gmra.mxu0 %v141
    %v195 = vpop.f32.mrf.mxu0
    %v196 = vadd.f32 0.0, %v195
    %v197 = vpop.f32.mrf.mxu0
    %v198 = vadd.f32 0.0, %v197
    %199 = vdwg.mxu0
    %200 = vmatpush.bf16.msra.mxu0 0
    %201 = vmatpush.bf16.msra.mxu0 0
    %202 = vmatpush.bf16.msra.mxu0 0
    %203 = vmatpush.bf16.msra.mxu0 0
    %204 = vmatpush.bf16.msra.mxu0 %v119
    %205 = vmatpush.bf16.msra.mxu0 %v115
    %206 = vmatpush.bf16.msra.mxu0 %v111
    %207 = vmatpush.bf16.msra.mxu0 %v107
    %208 = vmatmul.bf16.gmra.mxu0 %v138
    %v209 = vpop.f32.mrf.mxu0
    %v210 = vadd.f32 0.0, %v209
    %v211 = vpop.f32.mrf.mxu0
    %v212 = vadd.f32 0.0, %v211
    %213 = vmatmul.bf16.gmra.mxu0 %v141
    %v214 = vpop.f32.mrf.mxu0
    %v215 = vadd.f32 0.0, %v214
    %v216 = vpop.f32.mrf.mxu0
    %v217 = vadd.f32 0.0, %v216
    %218 = vdwg.mxu0
    %219 = vst [vmem:[%s4] sm:$0xff] %v153
    %220 = vst [vmem:[%s4 + $0x8] sm:$0xff] %v172
    %221 = vst [vmem:[%s4 + $0x10] sm:$0xff] %v191
    %222 = vst [vmem:[%s4 + $0x18] sm:$0xff] %v210
    %223 = vst [vmem:[%s4 + $0x20] sm:$0xff] %v155
    %224 = vst [vmem:[%s4 + $0x28] sm:$0xff] %v174
    %225 = vst [vmem:[%s4 + $0x30] sm:$0xff] %v193
    %226 = vst [vmem:[%s4 + $0x38] sm:$0xff] %v212
    %227 = vst [vmem:[%s4 + $0x40] sm:$0xff] %v158
    %228 = vst [vmem:[%s4 + $0x48] sm:$0xff] %v177
    %229 = vst [vmem:[%s4 + $0x50] sm:$0xff] %v196
    %230 = vst [vmem:[%s4 + $0x58] sm:$0xff] %v215
    %231 = vst [vmem:[%s4 + $0x60] sm:$0xff] %v160
    %232 = vst [vmem:[%s4 + $0x68] sm:$0xff] %v179
    %233 = vst [vmem:[%s4 + $0x70] sm:$0xff] %v198
    %234 = vst [vmem:[%s4 + $0x78] sm:$0xff] %v217
    // Predicated region
    $region22: #{dc_generator32_wn_forward.6} parent=1 // pred_check
      _
    $region23: #{dc_generator32_wn_forward.6} parent=1 // pred_check_branch
      %236 = sbr.rel (0) target = $region25
    $region24: #{dc_generator32_wn_forward.6} parent=1 // pred_region
      _
    $region25: #{dc_generator32_wn_forward.6} parent=1 // pred_fallthru
      _
    // Predicated region
    $region26: #{dc_generator32_wn_forward.6} parent=1 // pred_check
      _
    $region27: #{dc_generator32_wn_forward.6} parent=1 // pred_check_branch
      %238 = sbr.rel (0) target = $region29
    $region28: #{dc_generator32_wn_forward.6} parent=1 // pred_region
      _
    $region29: #{dc_generator32_wn_forward.6} parent=1 // pred_fallthru
      _
    %239 = vsyncpa [#allocation3], 1

// kernel: dc_generator32_wn_forward.7
$region0: #{dc_generator32_wn_forward.7}
  #allocation0 [shape = 'u32[]', space=smem, size = 0x4, offset = 0x4, fixed_abs, tag = 'smem constant byte address 0x4 - core index']
  #allocation1 [shape = 'u32[72,128]{1,0:T(1,128)}', space=vmem, size = 0x9000, scoped, tag = 'internal scratch']
  %s0 = inlined_call_operand.vmem [shape: f32[128,32], index: 0, kind: input, shape index: {}]
  %s1 = inlined_call_operand.vmem [shape: bf16[32,256], index: 1, kind: input, shape index: {}]
  %s2 = inlined_call_operand.vmem [shape: f32[1,32], index: 2, kind: input, shape index: {}]
  %s3 = inlined_call_operand.vmem [shape: f32[1,256], index: 3, kind: input, shape index: {}]
  %s4 = inlined_call_operand.vmem [shape: f32[128,256], index: 4, kind: output, shape index: {}]
  %s5 = sld [smem:[#allocation0]]
  $region26: #{dc_generator32_wn_forward.7} parent=0
    _
  %s7 = ssub.s32 1, %s5
  %s8 = scalar_select 0, %s7, %s5
  // Predicated region
  $region2: #{dc_generator32_wn_forward.7} parent=0 // pred_check
    _
  $region3: #{dc_generator32_wn_forward.7} parent=0 // pred_check_branch
    %10 = sbr.rel (0) target = $region5
  $region4: #{dc_generator32_wn_forward.7} parent=0 // pred_region
    _
  $region5: #{dc_generator32_wn_forward.7} parent=0 // pred_fallthru
    _
  // Predicated region
  $region6: #{dc_generator32_wn_forward.7} parent=0 // pred_check
    _
  $region7: #{dc_generator32_wn_forward.7} parent=0 // pred_check_branch
    %12 = sbr.rel (0) target = $region9
  $region8: #{dc_generator32_wn_forward.7} parent=0 // pred_region
    _
  $region9: #{dc_generator32_wn_forward.7} parent=0 // pred_fallthru
    _
  // Predicated region
  $region10: #{dc_generator32_wn_forward.7} parent=0 // pred_check
    _
  $region11: #{dc_generator32_wn_forward.7} parent=0 // pred_check_branch
    %14 = sbr.rel (0) target = $region13
  $region12: #{dc_generator32_wn_forward.7} parent=0 // pred_region
    _
  $region13: #{dc_generator32_wn_forward.7} parent=0 // pred_fallthru
    _
  // Predicated region
  $region14: #{dc_generator32_wn_forward.7} parent=0 // pred_check
    _
  $region15: #{dc_generator32_wn_forward.7} parent=0 // pred_check_branch
    %16 = sbr.rel (0) target = $region17
  $region16: #{dc_generator32_wn_forward.7} parent=0 // pred_region
    _
  $region17: #{dc_generator32_wn_forward.7} parent=0 // pred_fallthru
    _
  %v18 = vld [vmem:[%s0] sm:$0xff]
  %v19 = vld [vmem:[%s0 + $0x8] sm:$0xff]
  %v20 = vld [vmem:[%s0 + $0x10] sm:$0xff]
  %v21 = vld [vmem:[%s0 + $0x18] sm:$0xff]
  %v22 = vld [vmem:[%s0 + $0x20] sm:$0xff]
  %v23 = vld [vmem:[%s0 + $0x28] sm:$0xff]
  %v24 = vld [vmem:[%s0 + $0x30] sm:$0xff]
  %v25 = vld [vmem:[%s0 + $0x38] sm:$0xff]
  %v26 = vld [vmem:[%s0 + $0x40] sm:$0xff]
  %v27 = vld [vmem:[%s0 + $0x48] sm:$0xff]
  %v28 = vld [vmem:[%s0 + $0x50] sm:$0xff]
  %v29 = vld [vmem:[%s0 + $0x58] sm:$0xff]
  %v30 = vld [vmem:[%s0 + $0x60] sm:$0xff]
  %v31 = vld [vmem:[%s0 + $0x68] sm:$0xff]
  %v32 = vld [vmem:[%s0 + $0x70] sm:$0xff]
  %v33 = vld [vmem:[%s0 + $0x78] sm:$0xff]
  %v34 = vld [vmem:[%s2] sm:$0x1]
  %v36 = vperm.slane %v34, 0
  %v38 = vadd.f32 %v18, %v36
  %v39 = vadd.f32 %v19, %v36
  %v40 = vadd.f32 %v20, %v36
  %v41 = vadd.f32 %v21, %v36
  %v42 = vadd.f32 %v22, %v36
  %v43 = vadd.f32 %v23, %v36
  %v44 = vadd.f32 %v24, %v36
  %v45 = vadd.f32 %v25, %v36
  %v46 = vadd.f32 %v26, %v36
  %v47 = vadd.f32 %v27, %v36
  %v48 = vadd.f32 %v28, %v36
  %v49 = vadd.f32 %v29, %v36
  %v50 = vadd.f32 %v30, %v36
  %v51 = vadd.f32 %v31, %v36
  %v52 = vadd.f32 %v32, %v36
  %v53 = vadd.f32 %v33, %v36
  %v54 = vmax.f32 %v38, 0.0
  %v55 = vmax.f32 %v39, 0.0
  %v56 = vmax.f32 %v40, 0.0
  %v57 = vmax.f32 %v41, 0.0
  %v58 = vmax.f32 %v42, 0.0
  %v59 = vmax.f32 %v43, 0.0
  %v60 = vmax.f32 %v44, 0.0
  %v61 = vmax.f32 %v45, 0.0
  %v62 = vmax.f32 %v46, 0.0
  %v63 = vmax.f32 %v47, 0.0
  %v64 = vmax.f32 %v48, 0.0
  %v65 = vmax.f32 %v49, 0.0
  %v66 = vmax.f32 %v50, 0.0
  %v67 = vmax.f32 %v51, 0.0
  %v68 = vmax.f32 %v52, 0.0
  %v69 = vmax.f32 %v53, 0.0
  %v70 = vpack.c.bf16 %v55, %v54
  %v71 = vpack.c.bf16 %v57, %v56
  %v72 = vpack.c.bf16 %v59, %v58
  %v73 = vpack.c.bf16 %v61, %v60
  %v74 = vpack.c.bf16 %v63, %v62
  %v75 = vpack.c.bf16 %v65, %v64
  %v76 = vpack.c.bf16 %v67, %v66
  %v77 = vpack.c.bf16 %v69, %v68
  %v78 = vld [vmem:[%s1] sm:$0xff]
  %v79 = vld [vmem:[%s1 + $0x8] sm:$0xff]
  %v80 = vld [vmem:[%s1 + $0x10] sm:$0xff]
  %v81 = vld [vmem:[%s1 + $0x18] sm:$0xff]
  %v86 = vunpack.c.l.b16 %v78
  %v87 = vunpack.c.h.b16 %v78
  %v88 = vunpack.c.l.b16 %v79
  %v89 = vunpack.c.h.b16 %v79
  %v90 = vunpack.c.l.b16 %v80
  %v91 = vunpack.c.h.b16 %v80
  %v92 = vunpack.c.l.b16 %v81
  %v93 = vunpack.c.h.b16 %v81
  %v94 = vpack.c.b16 %v88, %v86
  %v95 = vpack.c.b16 %v89, %v87
  %v96 = vpack.c.b16 %v92, %v90
  %v97 = vpack.c.b16 %v93, %v91
  %vm102 = vcmask 261120
  %v104 = vsel %vm102, %v70, 0
  %v107 = vsel %vm102, %v71, 0
  %v110 = vsel %vm102, %v72, 0
  %v113 = vsel %vm102, %v73, 0
  %v116 = vsel %vm102, %v74, 0
  %v119 = vsel %vm102, %v75, 0
  %v122 = vsel %vm102, %v76, 0
  %v125 = vsel %vm102, %v77, 0
  %127 = vmatpush.bf16.msra.mxu0 0
  %128 = vmatpush.bf16.msra.mxu0 0
  %129 = vmatpush.bf16.msra.mxu0 0
  %130 = vmatpush.bf16.msra.mxu0 0
  %131 = vmatpush.bf16.msra.mxu0 0
  %132 = vmatpush.bf16.msra.mxu0 0
  %133 = vmatpush.bf16.msra.mxu0 %v96
  %134 = vmatpush.bf16.msra.mxu0 %v94
  %135 = vmatmul.bf16.gmra.mxu0 %v104
  %v136 = vpop.f32.mrf.mxu0
  %v137 = vadd.f32 0.0, %v136
  %v138 = vpop.f32.mrf.mxu0
  %v139 = vadd.f32 0.0, %v138
  %140 = vmatmul.bf16.gmra.mxu0 %v107
  %v141 = vpop.f32.mrf.mxu0
  %v142 = vadd.f32 0.0, %v141
  %v143 = vpop.f32.mrf.mxu0
  %v144 = vadd.f32 0.0, %v143
  %145 = vmatmul.bf16.gmra.mxu0 %v110
  %v146 = vpop.f32.mrf.mxu0
  %v147 = vadd.f32 0.0, %v146
  %v148 = vpop.f32.mrf.mxu0
  %v149 = vadd.f32 0.0, %v148
  %150 = vmatmul.bf16.gmra.mxu0 %v113
  %v151 = vpop.f32.mrf.mxu0
  %v152 = vadd.f32 0.0, %v151
  %v153 = vpop.f32.mrf.mxu0
  %v154 = vadd.f32 0.0, %v153
  %155 = vmatmul.bf16.gmra.mxu0 %v116
  %v156 = vpop.f32.mrf.mxu0
  %v157 = vadd.f32 0.0, %v156
  %v158 = vpop.f32.mrf.mxu0
  %v159 = vadd.f32 0.0, %v158
  %160 = vmatmul.bf16.gmra.mxu0 %v119
  %v161 = vpop.f32.mrf.mxu0
  %v162 = vadd.f32 0.0, %v161
  %v163 = vpop.f32.mrf.mxu0
  %v164 = vadd.f32 0.0, %v163
  %165 = vmatmul.bf16.gmra.mxu0 %v122
  %v166 = vpop.f32.mrf.mxu0
  %v167 = vadd.f32 0.0, %v166
  %v168 = vpop.f32.mrf.mxu0
  %v169 = vadd.f32 0.0, %v168
  %170 = vmatmul.bf16.gmra.mxu0 %v125
  %v171 = vpop.f32.mrf.mxu0
  %v172 = vadd.f32 0.0, %v171
  %v173 = vpop.f32.mrf.mxu0
  %v174 = vadd.f32 0.0, %v173
  %175 = vdwg.mxu0
  %176 = vmatpush.bf16.msra.mxu0 0
  %177 = vmatpush.bf16.msra.mxu0 0
  %178 = vmatpush.bf16.msra.mxu0 0
  %179 = vmatpush.bf16.msra.mxu0 0
  %180 = vmatpush.bf16.msra.mxu0 0
  %181 = vmatpush.bf16.msra.mxu0 0
  %182 = vmatpush.bf16.msra.mxu0 %v97
  %183 = vmatpush.bf16.msra.mxu0 %v95
  %184 = vmatmul.bf16.gmra.mxu0 %v104
  %v185 = vpop.f32.mrf.mxu0
  %v186 = vadd.f32 0.0, %v185
  %v187 = vpop.f32.mrf.mxu0
  %v188 = vadd.f32 0.0, %v187
  %189 = vmatmul.bf16.gmra.mxu0 %v107
  %v190 = vpop.f32.mrf.mxu0
  %v191 = vadd.f32 0.0, %v190
  %v192 = vpop.f32.mrf.mxu0
  %v193 = vadd.f32 0.0, %v192
  %194 = vmatmul.bf16.gmra.mxu0 %v110
  %v195 = vpop.f32.mrf.mxu0
  %v196 = vadd.f32 0.0, %v195
  %v197 = vpop.f32.mrf.mxu0
  %v198 = vadd.f32 0.0, %v197
  %199 = vmatmul.bf16.gmra.mxu0 %v113
  %v200 = vpop.f32.mrf.mxu0
  %v201 = vadd.f32 0.0, %v200
  %v202 = vpop.f32.mrf.mxu0
  %v203 = vadd.f32 0.0, %v202
  %204 = vmatmul.bf16.gmra.mxu0 %v116
  %v205 = vpop.f32.mrf.mxu0
  %v206 = vadd.f32 0.0, %v205
  %v207 = vpop.f32.mrf.mxu0
  %v208 = vadd.f32 0.0, %v207
  %209 = vmatmul.bf16.gmra.mxu0 %v119
  %v210 = vpop.f32.mrf.mxu0
  %v211 = vadd.f32 0.0, %v210
  %v212 = vpop.f32.mrf.mxu0
  %v213 = vadd.f32 0.0, %v212
  %214 = vmatmul.bf16.gmra.mxu0 %v122
  %v215 = vpop.f32.mrf.mxu0
  %v216 = vadd.f32 0.0, %v215
  %v217 = vpop.f32.mrf.mxu0
  %v218 = vadd.f32 0.0, %v217
  %219 = vmatmul.bf16.gmra.mxu0 %v125
  %v220 = vpop.f32.mrf.mxu0
  %v221 = vadd.f32 0.0, %v220
  %v222 = vpop.f32.mrf.mxu0
  %v223 = vadd.f32 0.0, %v222
  %224 = vdwg.mxu0
  %225 = vst [vmem:[%s4] sm:$0xff] %v137
  %226 = vst [vmem:[%s4 + $0x8] sm:$0xff] %v186
  %227 = vst [vmem:[%s4 + $0x10] sm:$0xff] %v139
  %228 = vst [vmem:[%s4 + $0x18] sm:$0xff] %v188
  %229 = vst [vmem:[%s4 + $0x20] sm:$0xff] %v142
  %230 = vst [vmem:[%s4 + $0x28] sm:$0xff] %v191
  %231 = vst [vmem:[%s4 + $0x30] sm:$0xff] %v144
  %232 = vst [vmem:[%s4 + $0x38] sm:$0xff] %v193
  %233 = vst [vmem:[%s4 + $0x40] sm:$0xff] %v147
  %234 = vst [vmem:[%s4 + $0x48] sm:$0xff] %v196
  %235 = vst [vmem:[%s4 + $0x50] sm:$0xff] %v149
  %236 = vst [vmem:[%s4 + $0x58] sm:$0xff] %v198
  %237 = vst [vmem:[%s4 + $0x60] sm:$0xff] %v152
  %238 = vst [vmem:[%s4 + $0x68] sm:$0xff] %v201
  %239 = vst [vmem:[%s4 + $0x70] sm:$0xff] %v154
  %240 = vst [vmem:[%s4 + $0x78] sm:$0xff] %v203
  %241 = vst [vmem:[%s4 + $0x80] sm:$0xff] %v157
  %242 = vst [vmem:[%s4 + $0x88] sm:$0xff] %v206
  %243 = vst [vmem:[%s4 + $0x90] sm:$0xff] %v159
  %244 = vst [vmem:[%s4 + $0x98] sm:$0xff] %v208
  %245 = vst [vmem:[%s4 + $0xa0] sm:$0xff] %v162
  %246 = vst [vmem:[%s4 + $0xa8] sm:$0xff] %v211
  %247 = vst [vmem:[%s4 + $0xb0] sm:$0xff] %v164
  %248 = vst [vmem:[%s4 + $0xb8] sm:$0xff] %v213
  %249 = vst [vmem:[%s4 + $0xc0] sm:$0xff] %v167
  %250 = vst [vmem:[%s4 + $0xc8] sm:$0xff] %v216
  %251 = vst [vmem:[%s4 + $0xd0] sm:$0xff] %v169
  %252 = vst [vmem:[%s4 + $0xd8] sm:$0xff] %v218
  %253 = vst [vmem:[%s4 + $0xe0] sm:$0xff] %v172
  %254 = vst [vmem:[%s4 + $0xe8] sm:$0xff] %v221
  %255 = vst [vmem:[%s4 + $0xf0] sm:$0xff] %v174
  %256 = vst [vmem:[%s4 + $0xf8] sm:$0xff] %v223
  // Predicated region
  $region18: #{dc_generator32_wn_forward.7} parent=0 // pred_check
    _
  $region19: #{dc_generator32_wn_forward.7} parent=0 // pred_check_branch
    %258 = sbr.rel (0) target = $region21
  $region20: #{dc_generator32_wn_forward.7} parent=0 // pred_region
    _
  $region21: #{dc_generator32_wn_forward.7} parent=0 // pred_fallthru
    _
  // Predicated region
  $region22: #{dc_generator32_wn_forward.7} parent=0 // pred_check
    _
  $region23: #{dc_generator32_wn_forward.7} parent=0 // pred_check_branch
    %260 = sbr.rel (0) target = $region25
  $region24: #{dc_generator32_wn_forward.7} parent=0 // pred_region
    _
  $region25: #{dc_generator32_wn_forward.7} parent=0 // pred_fallthru
    _

// kernel: dc_generator32_wn_forward.8
$region0: #{dc_generator32_wn_forward.8}
  #allocation0 [shape = 'u32[]', space=smem, size = 0x4, offset = 0x4, fixed_abs, tag = 'smem constant byte address 0x4 - core index']
  #allocation1 [shape = 'u32[72,128]{1,0:T(1,128)}', space=vmem, size = 0x9000, scoped, tag = 'internal scratch']
  %s0 = inlined_call_operand.vmem [shape: f32[512,16], index: 0, kind: input, shape index: {}]
  %s1 = inlined_call_operand.vmem [shape: bf16[16,128], index: 1, kind: input, shape index: {}]
  %s2 = inlined_call_operand.vmem [shape: f32[1,16], index: 2, kind: input, shape index: {}]
  %s3 = inlined_call_operand.vmem [shape: f32[1,128], index: 3, kind: input, shape index: {}]
  %s4 = inlined_call_operand.vmem [shape: f32[512,128], index: 4, kind: output, shape index: {}]
  %s5 = sld [smem:[#allocation0]]
  $region26: #{dc_generator32_wn_forward.8} parent=0
    _
  %s7 = ssub.s32 1, %s5
  %s8 = scalar_select 0, %s7, %s5
  // Predicated region
  $region2: #{dc_generator32_wn_forward.8} parent=0 // pred_check
    _
  $region3: #{dc_generator32_wn_forward.8} parent=0 // pred_check_branch
    %10 = sbr.rel (0) target = $region5
  $region4: #{dc_generator32_wn_forward.8} parent=0 // pred_region
    _
  $region5: #{dc_generator32_wn_forward.8} parent=0 // pred_fallthru
    _
  // Predicated region
  $region6: #{dc_generator32_wn_forward.8} parent=0 // pred_check
    _
  $region7: #{dc_generator32_wn_forward.8} parent=0 // pred_check_branch
    %12 = sbr.rel (0) target = $region9
  $region8: #{dc_generator32_wn_forward.8} parent=0 // pred_region
    _
  $region9: #{dc_generator32_wn_forward.8} parent=0 // pred_fallthru
    _
  // Predicated region
  $region10: #{dc_generator32_wn_forward.8} parent=0 // pred_check
    _
  $region11: #{dc_generator32_wn_forward.8} parent=0 // pred_check_branch
    %14 = sbr.rel (0) target = $region13
  $region12: #{dc_generator32_wn_forward.8} parent=0 // pred_region
    _
  $region13: #{dc_generator32_wn_forward.8} parent=0 // pred_fallthru
    _
  // Predicated region
  $region14: #{dc_generator32_wn_forward.8} parent=0 // pred_check
    _
  $region15: #{dc_generator32_wn_forward.8} parent=0 // pred_check_branch
    %16 = sbr.rel (0) target = $region17
  $region16: #{dc_generator32_wn_forward.8} parent=0 // pred_region
    _
  $region17: #{dc_generator32_wn_forward.8} parent=0 // pred_fallthru
    _
  %v18 = vld [vmem:[%s0] sm:$0xff]
  %v19 = vld [vmem:[%s0 + $0x8] sm:$0xff]
  %v20 = vld [vmem:[%s0 + $0x10] sm:$0xff]
  %v21 = vld [vmem:[%s0 + $0x18] sm:$0xff]
  %v22 = vld [vmem:[%s0 + $0x20] sm:$0xff]
  %v23 = vld [vmem:[%s0 + $0x28] sm:$0xff]
  %v24 = vld [vmem:[%s0 + $0x30] sm:$0xff]
  %v25 = vld [vmem:[%s0 + $0x38] sm:$0xff]
  %v26 = vld [vmem:[%s0 + $0x40] sm:$0xff]
  %v27 = vld [vmem:[%s0 + $0x48] sm:$0xff]
  %v28 = vld [vmem:[%s0 + $0x50] sm:$0xff]
  %v29 = vld [vmem:[%s0 + $0x58] sm:$0xff]
  %v30 = vld [vmem:[%s0 + $0x60] sm:$0xff]
  %v31 = vld [vmem:[%s0 + $0x68] sm:$0xff]
  %v32 = vld [vmem:[%s0 + $0x70] sm:$0xff]
  %v33 = vld [vmem:[%s0 + $0x78] sm:$0xff]
  %v34 = vld [vmem:[%s0 + $0x80] sm:$0xff]
  %v35 = vld [vmem:[%s0 + $0x88] sm:$0xff]
  %v36 = vld [vmem:[%s0 + $0x90] sm:$0xff]
  %v37 = vld [vmem:[%s0 + $0x98] sm:$0xff]
  %v38 = vld [vmem:[%s0 + $0xa0] sm:$0xff]
  %v39 = vld [vmem:[%s0 + $0xa8] sm:$0xff]
  %v40 = vld [vmem:[%s0 + $0xb0] sm:$0xff]
  %v41 = vld [vmem:[%s0 + $0xb8] sm:$0xff]
  %v42 = vld [vmem:[%s0 + $0xc0] sm:$0xff]
  %v43 = vld [vmem:[%s0 + $0xc8] sm:$0xff]
  %v44 = vld [vmem:[%s0 + $0xd0] sm:$0xff]
  %v45 = vld [vmem:[%s0 + $0xd8] sm:$0xff]
  %v46 = vld [vmem:[%s0 + $0xe0] sm:$0xff]
  %v47 = vld [vmem:[%s0 + $0xe8] sm:$0xff]
  %v48 = vld [vmem:[%s0 + $0xf0] sm:$0xff]
  %v49 = vld [vmem:[%s0 + $0xf8] sm:$0xff]
  %v50 = vld [vmem:[%s0 + $0x100] sm:$0xff]
  %v51 = vld [vmem:[%s0 + $0x108] sm:$0xff]
  %v52 = vld [vmem:[%s0 + $0x110] sm:$0xff]
  %v53 = vld [vmem:[%s0 + $0x118] sm:$0xff]
  %v54 = vld [vmem:[%s0 + $0x120] sm:$0xff]
  %v55 = vld [vmem:[%s0 + $0x128] sm:$0xff]
  %v56 = vld [vmem:[%s0 + $0x130] sm:$0xff]
  %v57 = vld [vmem:[%s0 + $0x138] sm:$0xff]
  %v58 = vld [vmem:[%s0 + $0x140] sm:$0xff]
  %v59 = vld [vmem:[%s0 + $0x148] sm:$0xff]
  %v60 = vld [vmem:[%s0 + $0x150] sm:$0xff]
  %v61 = vld [vmem:[%s0 + $0x158] sm:$0xff]
  %v62 = vld [vmem:[%s0 + $0x160] sm:$0xff]
  %v63 = vld [vmem:[%s0 + $0x168] sm:$0xff]
  %v64 = vld [vmem:[%s0 + $0x170] sm:$0xff]
  %v65 = vld [vmem:[%s0 + $0x178] sm:$0xff]
  %v66 = vld [vmem:[%s0 + $0x180] sm:$0xff]
  %v67 = vld [vmem:[%s0 + $0x188] sm:$0xff]
  %v68 = vld [vmem:[%s0 + $0x190] sm:$0xff]
  %v69 = vld [vmem:[%s0 + $0x198] sm:$0xff]
  %v70 = vld [vmem:[%s0 + $0x1a0] sm:$0xff]
  %v71 = vld [vmem:[%s0 + $0x1a8] sm:$0xff]
  %v72 = vld [vmem:[%s0 + $0x1b0] sm:$0xff]
  %v73 = vld [vmem:[%s0 + $0x1b8] sm:$0xff]
  %v74 = vld [vmem:[%s0 + $0x1c0] sm:$0xff]
  %v75 = vld [vmem:[%s0 + $0x1c8] sm:$0xff]
  %v76 = vld [vmem:[%s0 + $0x1d0] sm:$0xff]
  %v77 = vld [vmem:[%s0 + $0x1d8] sm:$0xff]
  %v78 = vld [vmem:[%s0 + $0x1e0] sm:$0xff]
  %v79 = vld [vmem:[%s0 + $0x1e8] sm:$0xff]
  %v80 = vld [vmem:[%s0 + $0x1f0] sm:$0xff]
  %v81 = vld [vmem:[%s0 + $0x1f8] sm:$0xff]
  %v82 = vld [vmem:[%s2] sm:$0x1]
  %v84 = vperm.slane %v82, 0
  %v86 = vadd.f32 %v18, %v84
  %v87 = vadd.f32 %v19, %v84
  %v88 = vadd.f32 %v20, %v84
  %v89 = vadd.f32 %v21, %v84
  %v90 = vadd.f32 %v22, %v84
  %v91 = vadd.f32 %v23, %v84
  %v92 = vadd.f32 %v24, %v84
  %v93 = vadd.f32 %v25, %v84
  %v94 = vadd.f32 %v26, %v84
  %v95 = vadd.f32 %v27, %v84
  %v96 = vadd.f32 %v28, %v84
  %v97 = vadd.f32 %v29, %v84
  %v98 = vadd.f32 %v30, %v84
  %v99 = vadd.f32 %v31, %v84
  %v100 = vadd.f32 %v32, %v84
  %v101 = vadd.f32 %v33, %v84
  %v102 = vadd.f32 %v34, %v84
  %v103 = vadd.f32 %v35, %v84
  %v104 = vadd.f32 %v36, %v84
  %v105 = vadd.f32 %v37, %v84
  %v106 = vadd.f32 %v38, %v84
  %v107 = vadd.f32 %v39, %v84
  %v108 = vadd.f32 %v40, %v84
  %v109 = vadd.f32 %v41, %v84
  %v110 = vadd.f32 %v42, %v84
  %v111 = vadd.f32 %v43, %v84
  %v112 = vadd.f32 %v44, %v84
  %v113 = vadd.f32 %v45, %v84
  %v114 = vadd.f32 %v46, %v84
  %v115 = vadd.f32 %v47, %v84
  %v116 = vadd.f32 %v48, %v84
  %v117 = vadd.f32 %v49, %v84
  %v118 = vadd.f32 %v50, %v84
  %v119 = vadd.f32 %v51, %v84
  %v120 = vadd.f32 %v52, %v84
  %v121 = vadd.f32 %v53, %v84
  %v122 = vadd.f32 %v54, %v84
  %v123 = vadd.f32 %v55, %v84
  %v124 = vadd.f32 %v56, %v84
  %v125 = vadd.f32 %v57, %v84
  %v126 = vadd.f32 %v58, %v84
  %v127 = vadd.f32 %v59, %v84
  %v128 = vadd.f32 %v60, %v84
  %v129 = vadd.f32 %v61, %v84
  %v130 = vadd.f32 %v62, %v84
  %v131 = vadd.f32 %v63, %v84
  %v132 = vadd.f32 %v64, %v84
  %v133 = vadd.f32 %v65, %v84
  %v134 = vadd.f32 %v66, %v84
  %v135 = vadd.f32 %v67, %v84
  %v136 = vadd.f32 %v68, %v84
  %v137 = vadd.f32 %v69, %v84
  %v138 = vadd.f32 %v70, %v84
  %v139 = vadd.f32 %v71, %v84
  %v140 = vadd.f32 %v72, %v84
  %v141 = vadd.f32 %v73, %v84
  %v142 = vadd.f32 %v74, %v84
  %v143 = vadd.f32 %v75, %v84
  %v144 = vadd.f32 %v76, %v84
  %v145 = vadd.f32 %v77, %v84
  %v146 = vadd.f32 %v78, %v84
  %v147 = vadd.f32 %v79, %v84
  %v148 = vadd.f32 %v80, %v84
  %v149 = vadd.f32 %v81, %v84
  %v150 = vmax.f32 %v86, 0.0
  %v151 = vmax.f32 %v87, 0.0
  %v152 = vmax.f32 %v88, 0.0
  %v153 = vmax.f32 %v89, 0.0
  %v154 = vmax.f32 %v90, 0.0
  %v155 = vmax.f32 %v91, 0.0
  %v156 = vmax.f32 %v92, 0.0
  %v157 = vmax.f32 %v93, 0.0
  %v158 = vmax.f32 %v94, 0.0
  %v159 = vmax.f32 %v95, 0.0
  %v160 = vmax.f32 %v96, 0.0
  %v161 = vmax.f32 %v97, 0.0
  %v162 = vmax.f32 %v98, 0.0
  %v163 = vmax.f32 %v99, 0.0
  %v164 = vmax.f32 %v100, 0.0
  %v165 = vmax.f32 %v101, 0.0
  %v166 = vmax.f32 %v102, 0.0
  %v167 = vmax.f32 %v103, 0.0
  %v168 = vmax.f32 %v104, 0.0
  %v169 = vmax.f32 %v105, 0.0
  %v170 = vmax.f32 %v106, 0.0
  %v171 = vmax.f32 %v107, 0.0
  %v172 = vmax.f32 %v108, 0.0
  %v173 = vmax.f32 %v109, 0.0
  %v174 = vmax.f32 %v110, 0.0
  %v175 = vmax.f32 %v111, 0.0
  %v176 = vmax.f32 %v112, 0.0
  %v177 = vmax.f32 %v113, 0.0
  %v178 = vmax.f32 %v114, 0.0
  %v179 = vmax.f32 %v115, 0.0
  %v180 = vmax.f32 %v116, 0.0
  %v181 = vmax.f32 %v117, 0.0
  %v182 = vmax.f32 %v118, 0.0
  %v183 = vmax.f32 %v119, 0.0
  %v184 = vmax.f32 %v120, 0.0
  %v185 = vmax.f32 %v121, 0.0
  %v186 = vmax.f32 %v122, 0.0
  %v187 = vmax.f32 %v123, 0.0
  %v188 = vmax.f32 %v124, 0.0
  %v189 = vmax.f32 %v125, 0.0
  %v190 = vmax.f32 %v126, 0.0
  %v191 = vmax.f32 %v127, 0.0
  %v192 = vmax.f32 %v128, 0.0
  %v193 = vmax.f32 %v129, 0.0
  %v194 = vmax.f32 %v130, 0.0
  %v195 = vmax.f32 %v131, 0.0
  %v196 = vmax.f32 %v132, 0.0
  %v197 = vmax.f32 %v133, 0.0
  %v198 = vmax.f32 %v134, 0.0
  %v199 = vmax.f32 %v135, 0.0
  %v200 = vmax.f32 %v136, 0.0
  %v201 = vmax.f32 %v137, 0.0
  %v202 = vmax.f32 %v138, 0.0
  %v203 = vmax.f32 %v139, 0.0
  %v204 = vmax.f32 %v140, 0.0
  %v205 = vmax.f32 %v141, 0.0
  %v206 = vmax.f32 %v142, 0.0
  %v207 = vmax.f32 %v143, 0.0
  %v208 = vmax.f32 %v144, 0.0
  %v209 = vmax.f32 %v145, 0.0
  %v210 = vmax.f32 %v146, 0.0
  %v211 = vmax.f32 %v147, 0.0
  %v212 = vmax.f32 %v148, 0.0
  %v213 = vmax.f32 %v149, 0.0
  %v214 = vpack.c.bf16 %v151, %v150
  %v215 = vpack.c.bf16 %v153, %v152
  %v216 = vpack.c.bf16 %v155, %v154
  %v217 = vpack.c.bf16 %v157, %v156
  %v218 = vpack.c.bf16 %v159, %v158
  %v219 = vpack.c.bf16 %v161, %v160
  %v220 = vpack.c.bf16 %v163, %v162
  %v221 = vpack.c.bf16 %v165, %v164
  %v222 = vpack.c.bf16 %v167, %v166
  %v223 = vpack.c.bf16 %v169, %v168
  %v224 = vpack.c.bf16 %v171, %v170
  %v225 = vpack.c.bf16 %v173, %v172
  %v226 = vpack.c.bf16 %v175, %v174
  %v227 = vpack.c.bf16 %v177, %v176
  %v228 = vpack.c.bf16 %v179, %v178
  %v229 = vpack.c.bf16 %v181, %v180
  %v230 = vpack.c.bf16 %v183, %v182
  %v231 = vpack.c.bf16 %v185, %v184
  %v232 = vpack.c.bf16 %v187, %v186
  %v233 = vpack.c.bf16 %v189, %v188
  %v234 = vpack.c.bf16 %v191, %v190
  %v235 = vpack.c.bf16 %v193, %v192
  %v236 = vpack.c.bf16 %v195, %v194
  %v237 = vpack.c.bf16 %v197, %v196
  %v238 = vpack.c.bf16 %v199, %v198
  %v239 = vpack.c.bf16 %v201, %v200
  %v240 = vpack.c.bf16 %v203, %v202
  %v241 = vpack.c.bf16 %v205, %v204
  %v242 = vpack.c.bf16 %v207, %v206
  %v243 = vpack.c.bf16 %v209, %v208
  %v244 = vpack.c.bf16 %v211, %v210
  %v245 = vpack.c.bf16 %v213, %v212
  %v246 = vld [vmem:[%s1] sm:$0xf]
  %v247 = vld [vmem:[%s1 + $0x4] sm:$0xf]
  %v250 = vunpack.c.l.b16 %v246
  %v251 = vunpack.c.l.b16 %v247
  %v252 = vpack.c.b16 %v251, %v250
  %vm254 = vcmask 130048
  %v256 = vsel %vm254, %v214, 0
  %v259 = vsel %vm254, %v215, 0
  %v262 = vsel %vm254, %v216, 0
  %v265 = vsel %vm254, %v217, 0
  %v268 = vsel %vm254, %v218, 0
  %v271 = vsel %vm254, %v219, 0
  %v274 = vsel %vm254, %v220, 0
  %v277 = vsel %vm254, %v221, 0
  %v280 = vsel %vm254, %v222, 0
  %v283 = vsel %vm254, %v223, 0
  %v286 = vsel %vm254, %v224, 0
  %v289 = vsel %vm254, %v225, 0
  %v292 = vsel %vm254, %v226, 0
  %v295 = vsel %vm254, %v227, 0
  %v298 = vsel %vm254, %v228, 0
  %v301 = vsel %vm254, %v229, 0
  %v304 = vsel %vm254, %v230, 0
  %v307 = vsel %vm254, %v231, 0
  %v310 = vsel %vm254, %v232, 0
  %v313 = vsel %vm254, %v233, 0
  %v316 = vsel %vm254, %v234, 0
  %v319 = vsel %vm254, %v235, 0
  %v322 = vsel %vm254, %v236, 0
  %v325 = vsel %vm254, %v237, 0
  %v328 = vsel %vm254, %v238, 0
  %v331 = vsel %vm254, %v239, 0
  %v334 = vsel %vm254, %v240, 0
  %v337 = vsel %vm254, %v241, 0
  %v340 = vsel %vm254, %v242, 0
  %v343 = vsel %vm254, %v243, 0
  %v346 = vsel %vm254, %v244, 0
  %v349 = vsel %vm254, %v245, 0
  %351 = vmatpush.bf16.msra.mxu0 0
  %352 = vmatpush.bf16.msra.mxu0 0
  %353 = vmatpush.bf16.msra.mxu0 0
  %354 = vmatpush.bf16.msra.mxu0 0
  %355 = vmatpush.bf16.msra.mxu0 0
  %356 = vmatpush.bf16.msra.mxu0 0
  %357 = vmatpush.bf16.msra.mxu0 0
  %358 = vmatpush.bf16.msra.mxu0 %v252
  %359 = vmatmul.bf16.gmra.mxu0 %v256
  %v360 = vpop.f32.mrf.mxu0
  %v361 = vadd.f32 0.0, %v360
  %v362 = vpop.f32.mrf.mxu0
  %v363 = vadd.f32 0.0, %v362
  %364 = vmatmul.bf16.gmra.mxu0 %v259
  %v365 = vpop.f32.mrf.mxu0
  %v366 = vadd.f32 0.0, %v365
  %v367 = vpop.f32.mrf.mxu0
  %v368 = vadd.f32 0.0, %v367
  %369 = vmatmul.bf16.gmra.mxu0 %v262
  %v370 = vpop.f32.mrf.mxu0
  %v371 = vadd.f32 0.0, %v370
  %v372 = vpop.f32.mrf.mxu0
  %v373 = vadd.f32 0.0, %v372
  %374 = vmatmul.bf16.gmra.mxu0 %v265
  %v375 = vpop.f32.mrf.mxu0
  %v376 = vadd.f32 0.0, %v375
  %v377 = vpop.f32.mrf.mxu0
  %v378 = vadd.f32 0.0, %v377
  %379 = vmatmul.bf16.gmra.mxu0 %v268
  %v380 = vpop.f32.mrf.mxu0
  %v381 = vadd.f32 0.0, %v380
  %v382 = vpop.f32.mrf.mxu0
  %v383 = vadd.f32 0.0, %v382
  %384 = vmatmul.bf16.gmra.mxu0 %v271
  %v385 = vpop.f32.mrf.mxu0
  %v386 = vadd.f32 0.0, %v385
  %v387 = vpop.f32.mrf.mxu0
  %v388 = vadd.f32 0.0, %v387
  %389 = vmatmul.bf16.gmra.mxu0 %v274
  %v390 = vpop.f32.mrf.mxu0
  %v391 = vadd.f32 0.0, %v390
  %v392 = vpop.f32.mrf.mxu0
  %v393 = vadd.f32 0.0, %v392
  %394 = vmatmul.bf16.gmra.mxu0 %v277
  %v395 = vpop.f32.mrf.mxu0
  %v396 = vadd.f32 0.0, %v395
  %v397 = vpop.f32.mrf.mxu0
  %v398 = vadd.f32 0.0, %v397
  %399 = vmatmul.bf16.gmra.mxu0 %v280
  %v400 = vpop.f32.mrf.mxu0
  %v401 = vadd.f32 0.0, %v400
  %v402 = vpop.f32.mrf.mxu0
  %v403 = vadd.f32 0.0, %v402
  %404 = vmatmul.bf16.gmra.mxu0 %v283
  %v405 = vpop.f32.mrf.mxu0
  %v406 = vadd.f32 0.0, %v405
  %v407 = vpop.f32.mrf.mxu0
  %v408 = vadd.f32 0.0, %v407
  %409 = vmatmul.bf16.gmra.mxu0 %v286
  %v410 = vpop.f32.mrf.mxu0
  %v411 = vadd.f32 0.0, %v410
  %v412 = vpop.f32.mrf.mxu0
  %v413 = vadd.f32 0.0, %v412
  %414 = vmatmul.bf16.gmra.mxu0 %v289
  %v415 = vpop.f32.mrf.mxu0
  %v416 = vadd.f32 0.0, %v415
  %v417 = vpop.f32.mrf.mxu0
  %v418 = vadd.f32 0.0, %v417
  %419 = vmatmul.bf16.gmra.mxu0 %v292
  %v420 = vpop.f32.mrf.mxu0
  %v421 = vadd.f32 0.0, %v420
  %v422 = vpop.f32.mrf.mxu0
  %v423 = vadd.f32 0.0, %v422
  %424 = vmatmul.bf16.gmra.mxu0 %v295
  %v425 = vpop.f32.mrf.mxu0
  %v426 = vadd.f32 0.0, %v425
  %v427 = vpop.f32.mrf.mxu0
  %v428 = vadd.f32 0.0, %v427
  %429 = vmatmul.bf16.gmra.mxu0 %v298
  %v430 = vpop.f32.mrf.mxu0
  %v431 = vadd.f32 0.0, %v430
  %v432 = vpop.f32.mrf.mxu0
  %v433 = vadd.f32 0.0, %v432
  %434 = vmatmul.bf16.gmra.mxu0 %v301
  %v435 = vpop.f32.mrf.mxu0
  %v436 = vadd.f32 0.0, %v435
  %v437 = vpop.f32.mrf.mxu0
  %v438 = vadd.f32 0.0, %v437
  %439 = vmatmul.bf16.gmra.mxu0 %v304
  %v440 = vpop.f32.mrf.mxu0
  %v441 = vadd.f32 0.0, %v440
  %v442 = vpop.f32.mrf.mxu0
  %v443 = vadd.f32 0.0, %v442
  %444 = vmatmul.bf16.gmra.mxu0 %v307
  %v445 = vpop.f32.mrf.mxu0
  %v446 = vadd.f32 0.0, %v445
  %v447 = vpop.f32.mrf.mxu0
  %v448 = vadd.f32 0.0, %v447
  %449 = vmatmul.bf16.gmra.mxu0 %v310
  %v450 = vpop.f32.mrf.mxu0
  %v451 = vadd.f32 0.0, %v450
  %v452 = vpop.f32.mrf.mxu0
  %v453 = vadd.f32 0.0, %v452
  %454 = vmatmul.bf16.gmra.mxu0 %v313
  %v455 = vpop.f32.mrf.mxu0
  %v456 = vadd.f32 0.0, %v455
  %v457 = vpop.f32.mrf.mxu0
  %v458 = vadd.f32 0.0, %v457
  %459 = vmatmul.bf16.gmra.mxu0 %v316
  %v460 = vpop.f32.mrf.mxu0
  %v461 = vadd.f32 0.0, %v460
  %v462 = vpop.f32.mrf.mxu0
  %v463 = vadd.f32 0.0, %v462
  %464 = vmatmul.bf16.gmra.mxu0 %v319
  %v465 = vpop.f32.mrf.mxu0
  %v466 = vadd.f32 0.0, %v465
  %v467 = vpop.f32.mrf.mxu0
  %v468 = vadd.f32 0.0, %v467
  %469 = vmatmul.bf16.gmra.mxu0 %v322
  %v470 = vpop.f32.mrf.mxu0
  %v471 = vadd.f32 0.0, %v470
  %v472 = vpop.f32.mrf.mxu0
  %v473 = vadd.f32 0.0, %v472
  %474 = vmatmul.bf16.gmra.mxu0 %v325
  %v475 = vpop.f32.mrf.mxu0
  %v476 = vadd.f32 0.0, %v475
  %v477 = vpop.f32.mrf.mxu0
  %v478 = vadd.f32 0.0, %v477
  %479 = vmatmul.bf16.gmra.mxu0 %v328
  %v480 = vpop.f32.mrf.mxu0
  %v481 = vadd.f32 0.0, %v480
  %v482 = vpop.f32.mrf.mxu0
  %v483 = vadd.f32 0.0, %v482
  %484 = vmatmul.bf16.gmra.mxu0 %v331
  %v485 = vpop.f32.mrf.mxu0
  %v486 = vadd.f32 0.0, %v485
  %v487 = vpop.f32.mrf.mxu0
  %v488 = vadd.f32 0.0, %v487
  %489 = vmatmul.bf16.gmra.mxu0 %v334
  %v490 = vpop.f32.mrf.mxu0
  %v491 = vadd.f32 0.0, %v490
  %v492 = vpop.f32.mrf.mxu0
  %v493 = vadd.f32 0.0, %v492
  %494 = vmatmul.bf16.gmra.mxu0 %v337
  %v495 = vpop.f32.mrf.mxu0
  %v496 = vadd.f32 0.0, %v495
  %v497 = vpop.f32.mrf.mxu0
  %v498 = vadd.f32 0.0, %v497
  %499 = vmatmul.bf16.gmra.mxu0 %v340
  %v500 = vpop.f32.mrf.mxu0
  %v501 = vadd.f32 0.0, %v500
  %v502 = vpop.f32.mrf.mxu0
  %v503 = vadd.f32 0.0, %v502
  %504 = vmatmul.bf16.gmra.mxu0 %v343
  %v505 = vpop.f32.mrf.mxu0
  %v506 = vadd.f32 0.0, %v505
  %v507 = vpop.f32.mrf.mxu0
  %v508 = vadd.f32 0.0, %v507
  %509 = vmatmul.bf16.gmra.mxu0 %v346
  %v510 = vpop.f32.mrf.mxu0
  %v511 = vadd.f32 0.0, %v510
  %v512 = vpop.f32.mrf.mxu0
  %v513 = vadd.f32 0.0, %v512
  %514 = vmatmul.bf16.gmra.mxu0 %v349
  %v515 = vpop.f32.mrf.mxu0
  %v516 = vadd.f32 0.0, %v515
  %v517 = vpop.f32.mrf.mxu0
  %v518 = vadd.f32 0.0, %v517
  %519 = vdwg.mxu0
  %520 = vst [vmem:[%s4] sm:$0xff] %v361
  %521 = vst [vmem:[%s4 + $0x8] sm:$0xff] %v363
  %522 = vst [vmem:[%s4 + $0x10] sm:$0xff] %v366
  %523 = vst [vmem:[%s4 + $0x18] sm:$0xff] %v368
  %524 = vst [vmem:[%s4 + $0x20] sm:$0xff] %v371
  %525 = vst [vmem:[%s4 + $0x28] sm:$0xff] %v373
  %526 = vst [vmem:[%s4 + $0x30] sm:$0xff] %v376
  %527 = vst [vmem:[%s4 + $0x38] sm:$0xff] %v378
  %528 = vst [vmem:[%s4 + $0x40] sm:$0xff] %v381
  %529 = vst [vmem:[%s4 + $0x48] sm:$0xff] %v383
  %530 = vst [vmem:[%s4 + $0x50] sm:$0xff] %v386
  %531 = vst [vmem:[%s4 + $0x58] sm:$0xff] %v388
  %532 = vst [vmem:[%s4 + $0x60] sm:$0xff] %v391
  %533 = vst [vmem:[%s4 + $0x68] sm:$0xff] %v393
  %534 = vst [vmem:[%s4 + $0x70] sm:$0xff] %v396
  %535 = vst [vmem:[%s4 + $0x78] sm:$0xff] %v398
  %536 = vst [vmem:[%s4 + $0x80] sm:$0xff] %v401
  %537 = vst [vmem:[%s4 + $0x88] sm:$0xff] %v403
  %538 = vst [vmem:[%s4 + $0x90] sm:$0xff] %v406
  %539 = vst [vmem:[%s4 + $0x98] sm:$0xff] %v408
  %540 = vst [vmem:[%s4 + $0xa0] sm:$0xff] %v411
  %541 = vst [vmem:[%s4 + $0xa8] sm:$0xff] %v413
  %542 = vst [vmem:[%s4 + $0xb0] sm:$0xff] %v416
  %543 = vst [vmem:[%s4 + $0xb8] sm:$0xff] %v418
  %544 = vst [vmem:[%s4 + $0xc0] sm:$0xff] %v421
  %545 = vst [vmem:[%s4 + $0xc8] sm:$0xff] %v423
  %546 = vst [vmem:[%s4 + $0xd0] sm:$0xff] %v426
  %547 = vst [vmem:[%s4 + $0xd8] sm:$0xff] %v428
  %548 = vst [vmem:[%s4 + $0xe0] sm:$0xff] %v431
  %549 = vst [vmem:[%s4 + $0xe8] sm:$0xff] %v433
  %550 = vst [vmem:[%s4 + $0xf0] sm:$0xff] %v436
  %551 = vst [vmem:[%s4 + $0xf8] sm:$0xff] %v438
  %552 = vst [vmem:[%s4 + $0x100] sm:$0xff] %v441
  %553 = vst [vmem:[%s4 + $0x108] sm:$0xff] %v443
  %554 = vst [vmem:[%s4 + $0x110] sm:$0xff] %v446
  %555 = vst [vmem:[%s4 + $0x118] sm:$0xff] %v448
  %556 = vst [vmem:[%s4 + $0x120] sm:$0xff] %v451
  %557 = vst [vmem:[%s4 + $0x128] sm:$0xff] %v453
  %558 = vst [vmem:[%s4 + $0x130] sm:$0xff] %v456
  %559 = vst [vmem:[%s4 + $0x138] sm:$0xff] %v458
  %560 = vst [vmem:[%s4 + $0x140] sm:$0xff] %v461
  %561 = vst [vmem:[%s4 + $0x148] sm:$0xff] %v463
  %562 = vst [vmem:[%s4 + $0x150] sm:$0xff] %v466
  %563 = vst [vmem:[%s4 + $0x158] sm:$0xff] %v468
  %564 = vst [vmem:[%s4 + $0x160] sm:$0xff] %v471
  %565 = vst [vmem:[%s4 + $0x168] sm:$0xff] %v473
  %566 = vst [vmem:[%s4 + $0x170] sm:$0xff] %v476
  %567 = vst [vmem:[%s4 + $0x178] sm:$0xff] %v478
  %568 = vst [vmem:[%s4 + $0x180] sm:$0xff] %v481
  %569 = vst [vmem:[%s4 + $0x188] sm:$0xff] %v483
  %570 = vst [vmem:[%s4 + $0x190] sm:$0xff] %v486
  %571 = vst [vmem:[%s4 + $0x198] sm:$0xff] %v488
  %572 = vst [vmem:[%s4 + $0x1a0] sm:$0xff] %v491
  %573 = vst [vmem:[%s4 + $0x1a8] sm:$0xff] %v493
  %574 = vst [vmem:[%s4 + $0x1b0] sm:$0xff] %v496
  %575 = vst [vmem:[%s4 + $0x1b8] sm:$0xff] %v498
  %576 = vst [vmem:[%s4 + $0x1c0] sm:$0xff] %v501
  %577 = vst [vmem:[%s4 + $0x1c8] sm:$0xff] %v503
  %578 = vst [vmem:[%s4 + $0x1d0] sm:$0xff] %v506
  %579 = vst [vmem:[%s4 + $0x1d8] sm:$0xff] %v508
  %580 = vst [vmem:[%s4 + $0x1e0] sm:$0xff] %v511
  %581 = vst [vmem:[%s4 + $0x1e8] sm:$0xff] %v513
  %582 = vst [vmem:[%s4 + $0x1f0] sm:$0xff] %v516
  %583 = vst [vmem:[%s4 + $0x1f8] sm:$0xff] %v518
  // Predicated region
  $region18: #{dc_generator32_wn_forward.8} parent=0 // pred_check
    _
  $region19: #{dc_generator32_wn_forward.8} parent=0 // pred_check_branch
    %585 = sbr.rel (0) target = $region21
  $region20: #{dc_generator32_wn_forward.8} parent=0 // pred_region
    _
  $region21: #{dc_generator32_wn_forward.8} parent=0 // pred_fallthru
    _
  // Predicated region
  $region22: #{dc_generator32_wn_forward.8} parent=0 // pred_check
    _
  $region23: #{dc_generator32_wn_forward.8} parent=0 // pred_check_branch
    %587 = sbr.rel (0) target = $region25
  $region24: #{dc_generator32_wn_forward.8} parent=0 // pred_region
    _
  $region25: #{dc_generator32_wn_forward.8} parent=0 // pred_fallthru
    _

// kernel: dc_generator32_wn_forward.9
$region0: #{dc_generator32_wn_forward.9}
  #allocation0 [shape = 'u32[]', space=smem, size = 0x4, offset = 0x4, fixed_abs, tag = 'smem constant byte address 0x4 - core index']
  #allocation1 [shape = 'u32[72,128]{1,0:T(1,128)}', space=vmem, size = 0x9000, scoped, tag = 'internal scratch']
  %s0 = inlined_call_operand.vmem [shape: bf16[3,72], index: 0, kind: input, shape index: {}]
  %s1 = inlined_call_operand.vmem [shape: f32[72,2048], index: 1, kind: input, shape index: {}]
  %s2 = inlined_call_operand.vmem [shape: f32[3,1], index: 2, kind: input, shape index: {}]
  %s3 = inlined_call_operand.vmem [shape: f32[3,2048], index: 3, kind: output, shape index: {}]
  %s4 = sld [smem:[#allocation0]]
  $region68: #{dc_generator32_wn_forward.9} parent=0
    _
  %s6 = ssub.s32 1, %s4
  %s7 = scalar_select 0, %s6, %s4
  $region1: #{dc_generator32_wn_forward.9} parent=0
    #allocation2 [shape = 'u8[294912]{0}', space=vmem, size = 0x48000, scoped, tag = 'input window, operand 1']
    loop: start=0, step=1, limit=6
    $region2: #{dc_generator32_wn_forward.9} parent=1 // loop_pre_header
      _
    $region3: #{dc_generator32_wn_forward.9} parent=1 // loop_header
      %s9 = sphi 0, %s13
      %p10 = scmp.ge.s32.totalorder %s9, 6
      %s17 = sphi 0, %s17
      %s19 = sphi 0, %s17
      %s20 = sphi 0, %s19
      %s34 = sphi 0, %s20
      %s40 = sphi 0, %s42
      %s43 = sphi 0, %s40
      %s44 = sphi 0, %s43
      %s60 = sphi 0, %s44
      %s64 = sphi 0, %s64
      %s66 = sphi 0, %s64
      %s67 = sphi 0, %s66
      %s81 = sphi 0, %s67
      %s87 = sphi 0, %s89
      %s90 = sphi 0, %s87
      %s91 = sphi 0, %s90
      %s107 = sphi 0, %s91
    $region4: #{dc_generator32_wn_forward.9} parent=1 // loop_header_branch
      %12 = sbr.rel (%p10) target = $region8
    $region5: #{dc_generator32_wn_forward.9} parent=1 // loop_body
      %s14 = ssub.s32 %s9, 1
      %s15 = ssub.s32 %s9, 2
      %s16 = sadd.s32 %s9, 1
      %s18 = sadd.s32 %s17, 1
      %p21 = scmp.eq.s32.totalorder %s9, 3
      %p22 = scmp.ne.s32.totalorder %s17, %s19
      %p23 = scmp.eq.s32.totalorder %s9, 0
      %p24 = por %p22, %p23
      %p25 = scmp.ne.s32.totalorder %s17, %s19
      %p26 = scmp.eq.s32.totalorder %s14, 3
      %p27 = por %p25, %p26
      %p28 = scmp.ne.s32.totalorder %s19, %s20
      %p29 = scmp.eq.s32.totalorder %s14, 0
      %p30 = por %p28, %p29
      %p31 = scmp.ne.s32.totalorder %s19, %s20
      %p32 = scmp.eq.s32.totalorder %s15, 3
      %p33 = por %p31, %p32
      %p35 = scmp.ne.s32.totalorder %s20, %s34
      %p36 = scmp.eq.s32.totalorder %s15, 0
      %p37 = por %p35, %p36
      %s38 = ssub.s32 %s9, %s16
      %p39 = scmp.eq.s32.totalorder %s38, 0
      %s41 = sadd.s32 %s40, 1
      %s42 = scalar_select %p39, %s40, %s41
      %p45 = pneg %p39
      %p46 = scmp.eq.s32.totalorder %s9, 3
      %p47 = por %p45, %p46
      %p48 = scmp.ne.s32.totalorder %s40, %s43
      %p49 = scmp.eq.s32.totalorder %s9, 0
      %p50 = por %p48, %p49
      %p51 = scmp.ne.s32.totalorder %s40, %s43
      %p52 = scmp.eq.s32.totalorder %s14, 3
      %p53 = por %p51, %p52
      %p54 = scmp.ne.s32.totalorder %s43, %s44
      %p55 = scmp.eq.s32.totalorder %s14, 0
      %p56 = por %p54, %p55
      %p57 = scmp.ne.s32.totalorder %s43, %s44
      %p58 = scmp.eq.s32.totalorder %s15, 3
      %p59 = por %p57, %p58
      %p61 = scmp.ne.s32.totalorder %s44, %s60
      %p62 = scmp.eq.s32.totalorder %s15, 0
      %p63 = por %p61, %p62
      %s65 = sadd.s32 %s64, 1
      %p68 = scmp.eq.s32.totalorder %s9, 3
      %p69 = scmp.ne.s32.totalorder %s64, %s66
      %p70 = scmp.eq.s32.totalorder %s9, 0
      %p71 = por %p69, %p70
      %p72 = scmp.ne.s32.totalorder %s64, %s66
      %p73 = scmp.eq.s32.totalorder %s14, 3
      %p74 = por %p72, %p73
      %p75 = scmp.ne.s32.totalorder %s66, %s67
      %p76 = scmp.eq.s32.totalorder %s14, 0
      %p77 = por %p75, %p76
      %p78 = scmp.ne.s32.totalorder %s66, %s67
      %p79 = scmp.eq.s32.totalorder %s15, 3
      %p80 = por %p78, %p79
      %p82 = scmp.ne.s32.totalorder %s67, %s81
      %p83 = scmp.eq.s32.totalorder %s15, 0
      %p84 = por %p82, %p83
      %s85 = ssub.s32 %s9, %s16
      %p86 = scmp.eq.s32.totalorder %s85, 0
      %s88 = sadd.s32 %s87, 1
      %s89 = scalar_select %p86, %s87, %s88
      %p92 = pneg %p86
      %p93 = scmp.eq.s32.totalorder %s9, 3
      %p94 = por %p92, %p93
      %p95 = scmp.ne.s32.totalorder %s87, %s90
      %p96 = scmp.eq.s32.totalorder %s9, 0
      %p97 = por %p95, %p96
      %p98 = scmp.ne.s32.totalorder %s87, %s90
      %p99 = scmp.eq.s32.totalorder %s14, 3
      %p100 = por %p98, %p99
      %p101 = scmp.ne.s32.totalorder %s90, %s91
      %p102 = scmp.eq.s32.totalorder %s14, 0
      %p103 = por %p101, %p102
      %p104 = scmp.ne.s32.totalorder %s90, %s91
      %p105 = scmp.eq.s32.totalorder %s15, 3
      %p106 = por %p104, %p105
      %p108 = scmp.ne.s32.totalorder %s91, %s107
      %p109 = scmp.eq.s32.totalorder %s15, 0
      %p110 = por %p108, %p109
      %p111 = scmp.le.s32.totalorder 1, %s9
      %p112 = scmp.lt.s32.totalorder %s9, 5
      %p113 = pnand %p111, %p112
      %p114 = pneg %p113
      // Predicated region
      $region9: #{dc_generator32_wn_forward.9} parent=5 // pred_check
        _
      $region10: #{dc_generator32_wn_forward.9} parent=5 // pred_check_branch
        %116 = sbr.rel (%p113) target = $region12
      $region11: #{dc_generator32_wn_forward.9} parent=5 // pred_region
        %s117 = ssub.s32 %s9, 1
        // Predicated region
        $region13: #{dc_generator32_wn_forward.9} parent=11 // pred_check
          %p118 = pneg %p30
        $region14: #{dc_generator32_wn_forward.9} parent=11 // pred_check_branch
          %120 = sbr.rel (%p118) target = $region16
        $region15: #{dc_generator32_wn_forward.9} parent=11 // pred_region
          _
        $region16: #{dc_generator32_wn_forward.9} parent=11 // pred_fallthru
          _
        // Predicated region
        $region17: #{dc_generator32_wn_forward.9} parent=11 // pred_check
          %p121 = pneg %p77
        $region18: #{dc_generator32_wn_forward.9} parent=11 // pred_check_branch
          %123 = sbr.rel (%p121) target = $region20
        $region19: #{dc_generator32_wn_forward.9} parent=11 // pred_region
          _
        $region20: #{dc_generator32_wn_forward.9} parent=11 // pred_fallthru
          _
      $region12: #{dc_generator32_wn_forward.9} parent=5 // pred_fallthru
        _
      %p124 = scmp.lt.s32.totalorder %s9, 4
      // Predicated region
      $region21: #{dc_generator32_wn_forward.9} parent=5 // pred_check
        %p125 = pneg %p124
      $region22: #{dc_generator32_wn_forward.9} parent=5 // pred_check_branch
        %127 = sbr.rel (%p125) target = $region24
      $region23: #{dc_generator32_wn_forward.9} parent=5 // pred_region
        // Predicated region
        $region25: #{dc_generator32_wn_forward.9} parent=23 // pred_check
          %p128 = pneg %p50
        $region26: #{dc_generator32_wn_forward.9} parent=23 // pred_check_branch
          %130 = sbr.rel (%p128) target = $region28
        $region27: #{dc_generator32_wn_forward.9} parent=23 // pred_region
          %s131 = sand.u32 %s40, 1
          %s132 = sand.u32 %s40, 1
          %s133 = smul.addr %s132, 288
          %s134 = scalar_lea.vmem [#allocation2], %s133
          %s135 = smul.u32 4, %s9
          %s136 = smul.addr %s135, 8
          %s137 = scalar_lea.vmem %s1, %s136
          // Predicated region
          $region29: #{dc_generator32_wn_forward.9} parent=27 // pred_check
            _
          $region30: #{dc_generator32_wn_forward.9} parent=27 // pred_check_branch
            %139 = sbr.rel (0) target = $region32
          $region31: #{dc_generator32_wn_forward.9} parent=27 // pred_region
            // Predicated region
            $region33: #{dc_generator32_wn_forward.9} parent=31 // pred_check
              _
            $region34: #{dc_generator32_wn_forward.9} parent=31 // pred_check_branch
              %141 = sbr.rel (0) target = $region36
            $region35: #{dc_generator32_wn_forward.9} parent=31 // pred_region
              loop: start=0, step=1, limit=1
              $region37: #{dc_generator32_wn_forward.9} parent=35 // loop_pre_header
                _
              $region38: #{dc_generator32_wn_forward.9} parent=35 // loop_header
                %s143 = sphi 0, %s147
                %p144 = scmp.ge.s32.totalorder %s143, 1
                %s148 = sphi %s137, %s137
                %s149 = sphi %s134, %s134
              $region39: #{dc_generator32_wn_forward.9} parent=35 // loop_header_branch
                %146 = sbr.rel (%p144) target = $region43
              $region40: #{dc_generator32_wn_forward.9} parent=35 // loop_body
                %v150 = vld [vmem:[%s148] sm:$0xff]
                %151 = vst [vmem:[%s149] sm:$0xff] %v150
                %v152 = vld [vmem:[%s148 + $0x8] sm:$0xff]
                %153 = vst [vmem:[%s149 + $0x8] sm:$0xff] %v152
                %v154 = vld [vmem:[%s148 + $0x10] sm:$0xff]
                %155 = vst [vmem:[%s149 + $0x10] sm:$0xff] %v154
                %v156 = vld [vmem:[%s148 + $0x18] sm:$0xff]
                %157 = vst [vmem:[%s149 + $0x18] sm:$0xff] %v156
                %v158 = vld [vmem:[%s148 + $0x80] sm:$0xff]
                %159 = vst [vmem:[%s149 + $0x20] sm:$0xff] %v158
                %v160 = vld [vmem:[%s148 + $0x88] sm:$0xff]
                %161 = vst [vmem:[%s149 + $0x28] sm:$0xff] %v160
                %v162 = vld [vmem:[%s148 + $0x90] sm:$0xff]
                %163 = vst [vmem:[%s149 + $0x30] sm:$0xff] %v162
                %v164 = vld [vmem:[%s148 + $0x98] sm:$0xff]
                %165 = vst [vmem:[%s149 + $0x38] sm:$0xff] %v164
                %v166 = vld [vmem:[%s148 + $0x100] sm:$0xff]
                %167 = vst [vmem:[%s149 + $0x40] sm:$0xff] %v166
                %v168 = vld [vmem:[%s148 + $0x108] sm:$0xff]
                %169 = vst [vmem:[%s149 + $0x48] sm:$0xff] %v168
                %v170 = vld [vmem:[%s148 + $0x110] sm:$0xff]
                %171 = vst [vmem:[%s149 + $0x50] sm:$0xff] %v170
                %v172 = vld [vmem:[%s148 + $0x118] sm:$0xff]
                %173 = vst [vmem:[%s149 + $0x58] sm:$0xff] %v172
                %v174 = vld [vmem:[%s148 + $0x180] sm:$0xff]
                %175 = vst [vmem:[%s149 + $0x60] sm:$0xff] %v174
                %v176 = vld [vmem:[%s148 + $0x188] sm:$0xff]
                %177 = vst [vmem:[%s149 + $0x68] sm:$0xff] %v176
                %v178 = vld [vmem:[%s148 + $0x190] sm:$0xff]
                %179 = vst [vmem:[%s149 + $0x70] sm:$0xff] %v178
                %v180 = vld [vmem:[%s148 + $0x198] sm:$0xff]
                %181 = vst [vmem:[%s149 + $0x78] sm:$0xff] %v180
                %v182 = vld [vmem:[%s148 + $0x200] sm:$0xff]
                %183 = vst [vmem:[%s149 + $0x80] sm:$0xff] %v182
                %v184 = vld [vmem:[%s148 + $0x208] sm:$0xff]
                %185 = vst [vmem:[%s149 + $0x88] sm:$0xff] %v184
                %v186 = vld [vmem:[%s148 + $0x210] sm:$0xff]
                %187 = vst [vmem:[%s149 + $0x90] sm:$0xff] %v186
                %v188 = vld [vmem:[%s148 + $0x218] sm:$0xff]
                %189 = vst [vmem:[%s149 + $0x98] sm:$0xff] %v188
                %v190 = vld [vmem:[%s148 + $0x280] sm:$0xff]
                %191 = vst [vmem:[%s149 + $0xa0] sm:$0xff] %v190
                %v192 = vld [vmem:[%s148 + $0x288] sm:$0xff]
                %193 = vst [vmem:[%s149 + $0xa8] sm:$0xff] %v192
                %v194 = vld [vmem:[%s148 + $0x290] sm:$0xff]
                %195 = vst [vmem:[%s149 + $0xb0] sm:$0xff] %v194
                %v196 = vld [vmem:[%s148 + $0x298] sm:$0xff]
                %197 = vst [vmem:[%s149 + $0xb8] sm:$0xff] %v196
                %v198 = vld [vmem:[%s148 + $0x300] sm:$0xff]
                %199 = vst [vmem:[%s149 + $0xc0] sm:$0xff] %v198
                %v200 = vld [vmem:[%s148 + $0x308] sm:$0xff]
                %201 = vst [vmem:[%s149 + $0xc8] sm:$0xff] %v200
                %v202 = vld [vmem:[%s148 + $0x310] sm:$0xff]
                %203 = vst [vmem:[%s149 + $0xd0] sm:$0xff] %v202
                %v204 = vld [vmem:[%s148 + $0x318] sm:$0xff]
                %205 = vst [vmem:[%s149 + $0xd8] sm:$0xff] %v204
                %v206 = vld [vmem:[%s148 + $0x380] sm:$0xff]
                %207 = vst [vmem:[%s149 + $0xe0] sm:$0xff] %v206
                %v208 = vld [vmem:[%s148 + $0x388] sm:$0xff]
                %209 = vst [vmem:[%s149 + $0xe8] sm:$0xff] %v208
                %v210 = vld [vmem:[%s148 + $0x390] sm:$0xff]
                %211 = vst [vmem:[%s149 + $0xf0] sm:$0xff] %v210
                %v212 = vld [vmem:[%s148 + $0x398] sm:$0xff]
                %213 = vst [vmem:[%s149 + $0xf8] sm:$0xff] %v212
                %v214 = vld [vmem:[%s148 + $0x400] sm:$0xff]
                %215 = vst [vmem:[%s149 + $0x100] sm:$0xff] %v214
                %v216 = vld [vmem:[%s148 + $0x408] sm:$0xff]
                %217 = vst [vmem:[%s149 + $0x108] sm:$0xff] %v216
                %v218 = vld [vmem:[%s148 + $0x410] sm:$0xff]
                %219 = vst [vmem:[%s149 + $0x110] sm:$0xff] %v218
                %v220 = vld [vmem:[%s148 + $0x418] sm:$0xff]
                %221 = vst [vmem:[%s149 + $0x118] sm:$0xff] %v220
              $region41: #{dc_generator32_wn_forward.9} parent=35 // loop_footer
                %s147 = sadd.s32 1, %s143
              $region42: #{dc_generator32_wn_forward.9} parent=35 // loop_footer_branch
                %142 = sbr.rel target = $region38
              $region43: #{dc_generator32_wn_forward.9} parent=35 // loop_exit
                _
            $region36: #{dc_generator32_wn_forward.9} parent=31 // pred_fallthru
              _
            // Predicated region
            $region44: #{dc_generator32_wn_forward.9} parent=31 // pred_check
              _
            $region45: #{dc_generator32_wn_forward.9} parent=31 // pred_check_branch
              %223 = sbr.rel target = $region47
            $region46: #{dc_generator32_wn_forward.9} parent=31 // pred_region
              _
            $region47: #{dc_generator32_wn_forward.9} parent=31 // pred_fallthru
              _
          $region32: #{dc_generator32_wn_forward.9} parent=27 // pred_fallthru
            _
          %224 = vnop
        $region28: #{dc_generator32_wn_forward.9} parent=23 // pred_fallthru
          _
      $region24: #{dc_generator32_wn_forward.9} parent=5 // pred_fallthru
        _
      %p225 = scmp.le.s32.totalorder 1, %s9
      %p226 = scmp.lt.s32.totalorder %s9, 5
      %p227 = pnand %p225, %p226
      %p228 = pneg %p227
      // Predicated region
      $region48: #{dc_generator32_wn_forward.9} parent=5 // pred_check
        _
      $region49: #{dc_generator32_wn_forward.9} parent=5 // pred_check_branch
        %230 = sbr.rel (%p227) target = $region51
      $region50: #{dc_generator32_wn_forward.9} parent=5 // pred_region
        %s231 = ssub.s32 %s9, 1
        %s232 = sand.u32 %s43, 1
        %s233 = sand.u32 %s43, 1
        %s234 = smul.addr %s233, 288
        %s235 = scalar_lea.vmem [#allocation2], %s234
        // Predicated region
        $region52: #{dc_generator32_wn_forward.9} parent=50 // pred_check
          %p236 = pneg %p56
        $region53: #{dc_generator32_wn_forward.9} parent=50 // pred_check_branch
          %238 = sbr.rel (%p236) target = $region55
        $region54: #{dc_generator32_wn_forward.9} parent=50 // pred_region
          _
        $region55: #{dc_generator32_wn_forward.9} parent=50 // pred_fallthru
          _
        %p239 = pneg %p30
        %p240 = pneg %p27
        %s241 = sand.u32 %s43, 1
        %s242 = sand.u32 %s43, 1
        %s243 = smul.addr %s242, 288
        %s244 = scalar_lea.vmem [#allocation2], %s243
        %p245 = pneg %p56
        %p246 = pneg %p53
        %p247 = pneg %p77
        %p248 = pneg %p74
        %p249 = pneg %p103
        %p250 = pneg %p100
        %s251 = smul.u32 4, %s14
        %p252 = scmp.lt.s32.totalorder %s251, 15
        %s253 = scalar_select %p252, %s251, 15
        %s254 = smul.addr %s253, 4
        %s255 = scalar_lea.vmem %s3, %s254
        %s256 = smul.u32 4, %s14
        %s257 = smul.u32 4, %s14
        %p258 = scmp.lt.s32.totalorder %s257, 15
        %s259 = scalar_select %p258, %s257, 15
        %s260 = smul.addr %s259, 4
        %s261 = scalar_lea.vmem %s3, %s260
        %s262 = smul.u32 4, %s14
        %v264 = vld [vmem:[%s0] sm:$0x3]
        %v265 = vld [vmem:[%s235] sm:$0xff]
        %v266 = vld [vmem:[%s235 + $0x8] sm:$0xff]
        %v267 = vld [vmem:[%s235 + $0x10] sm:$0xff]
        %v268 = vld [vmem:[%s235 + $0x18] sm:$0xff]
        %v269 = vld [vmem:[%s235 + $0x20] sm:$0xff]
        %v270 = vld [vmem:[%s235 + $0x28] sm:$0xff]
        %v271 = vld [vmem:[%s235 + $0x30] sm:$0xff]
        %v272 = vld [vmem:[%s235 + $0x38] sm:$0xff]
        %v273 = vld [vmem:[%s235 + $0x40] sm:$0xff]
        %v274 = vld [vmem:[%s235 + $0x48] sm:$0xff]
        %v275 = vld [vmem:[%s235 + $0x50] sm:$0xff]
        %v276 = vld [vmem:[%s235 + $0x58] sm:$0xff]
        %v277 = vld [vmem:[%s235 + $0x60] sm:$0xff]
        %v278 = vld [vmem:[%s235 + $0x68] sm:$0xff]
        %v279 = vld [vmem:[%s235 + $0x70] sm:$0xff]
        %v280 = vld [vmem:[%s235 + $0x78] sm:$0xff]
        %v281 = vld [vmem:[%s235 + $0x80] sm:$0xff]
        %v282 = vld [vmem:[%s235 + $0x88] sm:$0xff]
        %v283 = vld [vmem:[%s235 + $0x90] sm:$0xff]
        %v284 = vld [vmem:[%s235 + $0x98] sm:$0xff]
        %v285 = vld [vmem:[%s235 + $0xa0] sm:$0xff]
        %v286 = vld [vmem:[%s235 + $0xa8] sm:$0xff]
        %v287 = vld [vmem:[%s235 + $0xb0] sm:$0xff]
        %v288 = vld [vmem:[%s235 + $0xb8] sm:$0xff]
        %v289 = vld [vmem:[%s235 + $0xc0] sm:$0xff]
        %v290 = vld [vmem:[%s235 + $0xc8] sm:$0xff]
        %v291 = vld [vmem:[%s235 + $0xd0] sm:$0xff]
        %v292 = vld [vmem:[%s235 + $0xd8] sm:$0xff]
        %v293 = vld [vmem:[%s235 + $0xe0] sm:$0xff]
        %v294 = vld [vmem:[%s235 + $0xe8] sm:$0xff]
        %v295 = vld [vmem:[%s235 + $0xf0] sm:$0xff]
        %v296 = vld [vmem:[%s235 + $0xf8] sm:$0xff]
        %v297 = vld [vmem:[%s235 + $0x100] sm:$0xff]
        %v298 = vld [vmem:[%s235 + $0x108] sm:$0xff]
        %v299 = vld [vmem:[%s235 + $0x110] sm:$0xff]
        %v300 = vld [vmem:[%s235 + $0x118] sm:$0xff]
        %v301 = vpack.c.bf16 %v269, %v265
        %v302 = vpack.c.bf16 %v270, %v266
        %v303 = vpack.c.bf16 %v271, %v267
        %v304 = vpack.c.bf16 %v272, %v268
        %v305 = vpack.c.bf16 %v277, %v273
        %v306 = vpack.c.bf16 %v278, %v274
        %v307 = vpack.c.bf16 %v279, %v275
        %v308 = vpack.c.bf16 %v280, %v276
        %v309 = vpack.c.bf16 %v285, %v281
        %v310 = vpack.c.bf16 %v286, %v282
        %v311 = vpack.c.bf16 %v287, %v283
        %v312 = vpack.c.bf16 %v288, %v284
        %v313 = vpack.c.bf16 %v293, %v289
        %v314 = vpack.c.bf16 %v294, %v290
        %v315 = vpack.c.bf16 %v295, %v291
        %v316 = vpack.c.bf16 %v296, %v292
        %v317 = vpack.c.bf16 %v297, %v297
        %v318 = vpack.c.bf16 %v298, %v298
        %v319 = vpack.c.bf16 %v299, %v299
        %v320 = vpack.c.bf16 %v300, %v300
        %v321 = vld [vmem:[%s2] sm:$0x7]
        %323 = vset.pattern.permute.xlu0 0
        %324 = vperm.xlu0 %323, %v321
        %v325 = vpop.permute.xlu0 %324
        %vm327 = vcmask 588800
        %v329 = vsel %vm327, %v264, 0
        %vm331 = vcmask 1043456
        %v333 = vsel %vm331, %v317, 0
        %v336 = vsel %vm331, %v318, 0
        %v339 = vsel %vm331, %v319, 0
        %v342 = vsel %vm331, %v320, 0
        %344 = vmatpush.bf16.msra.mxu0 0
        %345 = vmatpush.bf16.msra.mxu0 0
        %346 = vmatpush.bf16.msra.mxu0 0
        %347 = vmatpush.bf16.msra.mxu0 %v333
        %348 = vmatpush.bf16.msra.mxu0 %v313
        %349 = vmatpush.bf16.msra.mxu0 %v309
        %350 = vmatpush.bf16.msra.mxu0 %v305
        %351 = vmatpush.bf16.msra.mxu0 %v301
        %352 = vmatmul.bf16.gmra.mxu0 %v329
        %v353 = vpop.f32.mrf.mxu0
        %v354 = vadd.f32 %v325, %v353
        %v355 = vpop.f32.mrf.mxu0
        %356 = vdwg.mxu0
        %357 = vmatpush.bf16.msra.mxu0 0
        %358 = vmatpush.bf16.msra.mxu0 0
        %359 = vmatpush.bf16.msra.mxu0 0
        %360 = vmatpush.bf16.msra.mxu0 %v336
        %361 = vmatpush.bf16.msra.mxu0 %v314
        %362 = vmatpush.bf16.msra.mxu0 %v310
        %363 = vmatpush.bf16.msra.mxu0 %v306
        %364 = vmatpush.bf16.msra.mxu0 %v302
        %365 = vmatmul.bf16.gmra.mxu0 %v329
        %v366 = vpop.f32.mrf.mxu0
        %v367 = vadd.f32 %v325, %v366
        %v368 = vpop.f32.mrf.mxu0
        %369 = vdwg.mxu0
        %370 = vmatpush.bf16.msra.mxu0 0
        %371 = vmatpush.bf16.msra.mxu0 0
        %372 = vmatpush.bf16.msra.mxu0 0
        %373 = vmatpush.bf16.msra.mxu0 %v339
        %374 = vmatpush.bf16.msra.mxu0 %v315
        %375 = vmatpush.bf16.msra.mxu0 %v311
        %376 = vmatpush.bf16.msra.mxu0 %v307
        %377 = vmatpush.bf16.msra.mxu0 %v303
        %378 = vmatmul.bf16.gmra.mxu0 %v329
        %v379 = vpop.f32.mrf.mxu0
        %v380 = vadd.f32 %v325, %v379
        %v381 = vpop.f32.mrf.mxu0
        %382 = vdwg.mxu0
        %383 = vmatpush.bf16.msra.mxu0 0
        %384 = vmatpush.bf16.msra.mxu0 0
        %385 = vmatpush.bf16.msra.mxu0 0
        %386 = vmatpush.bf16.msra.mxu0 %v342
        %387 = vmatpush.bf16.msra.mxu0 %v316
        %388 = vmatpush.bf16.msra.mxu0 %v312
        %389 = vmatpush.bf16.msra.mxu0 %v308
        %390 = vmatpush.bf16.msra.mxu0 %v304
        %391 = vmatmul.bf16.gmra.mxu0 %v329
        %v392 = vpop.f32.mrf.mxu0
        %v393 = vadd.f32 %v325, %v392
        %v394 = vpop.f32.mrf.mxu0
        %395 = vdwg.mxu0
        %v396 = vtanh.pop %v354
        %v397 = vtanh.pop %v367
        %v398 = vtanh.pop %v380
        %v399 = vtanh.pop %v393
        %v404 = vrot.slane %v397, 4
        %v405 = vrot.slane %v399, 4
        %v406 = vsel %vm331, %v396, %v404
        %v407 = vsel %vm331, %v398, %v405
        %410 = vst [vmem:[%s261] sm:$0x77] %v406
        %411 = vst [vmem:[%s261 + $0x8] sm:$0x77] %v407
        %s412 = smul.u32 4, %s14
        %p413 = scmp.lt.s32.totalorder %s412, 15
        %s414 = scalar_select %p413, %s412, 15
        %s415 = smul.addr %s414, 4
        %s416 = scalar_lea.vmem %s3, %s415
        // Predicated region
        $region56: #{dc_generator32_wn_forward.9} parent=50 // pred_check
          %p417 = pneg %p100
        $region57: #{dc_generator32_wn_forward.9} parent=50 // pred_check_branch
          %419 = sbr.rel (%p417) target = $region59
        $region58: #{dc_generator32_wn_forward.9} parent=50 // pred_region
          %s420 = smul.u32 4, %s14
        $region59: #{dc_generator32_wn_forward.9} parent=50 // pred_fallthru
          _
      $region51: #{dc_generator32_wn_forward.9} parent=5 // pred_fallthru
        _
      %p421 = scmp.le.s32.totalorder 2, %s9
      // Predicated region
      $region60: #{dc_generator32_wn_forward.9} parent=5 // pred_check
        %p422 = pneg %p421
      $region61: #{dc_generator32_wn_forward.9} parent=5 // pred_check_branch
        %424 = sbr.rel (%p422) target = $region63
      $region62: #{dc_generator32_wn_forward.9} parent=5 // pred_region
        %s425 = ssub.s32 %s9, 2
        // Predicated region
        $region64: #{dc_generator32_wn_forward.9} parent=62 // pred_check
          %p426 = pneg %p106
        $region65: #{dc_generator32_wn_forward.9} parent=62 // pred_check_branch
          %428 = sbr.rel (%p426) target = $region67
        $region66: #{dc_generator32_wn_forward.9} parent=62 // pred_region
          %s429 = smul.u32 4, %s15
          %p430 = scmp.lt.s32.totalorder %s429, 15
          %s431 = scalar_select %p430, %s429, 15
          %s432 = smul.addr %s431, 4
          %s433 = scalar_lea.vmem %s3, %s432
        $region67: #{dc_generator32_wn_forward.9} parent=62 // pred_fallthru
          _
      $region63: #{dc_generator32_wn_forward.9} parent=5 // pred_fallthru
        _
    $region6: #{dc_generator32_wn_forward.9} parent=1 // loop_footer
      %s13 = sadd.s32 1, %s9
    $region7: #{dc_generator32_wn_forward.9} parent=1 // loop_footer_branch
      %8 = sbr.rel target = $region3
    $region8: #{dc_generator32_wn_forward.9} parent=1 // loop_exit
      _

</llo_original>
